<compile_context>
chip_gen: v7x
topology: tpu7x:2x2x1
jax: 0.10.0
libtpu: 0.0.40
codegen_flags: <defaults>
</compile_context>

<pallas_src>
import jax
import jax.numpy as jnp
from jax.experimental import pallas as pl
from jax.experimental.pallas import tpu as pltpu


def _decoder_step_kernel(
    y_ref, s_prev_ref, enc_ref, keys_ref, mask_ref,
    emb_ref, wa_s_ref, va_ref,
    wih0e_ref, wih0c_ref, whh0_ref, bih0_ref, bhh0_ref,
    wih1_ref, whh1_ref, bih1_ref, bhh1_ref,
    wpe_ref, wpc_ref, wph_ref, bp_ref,
    logp_ref, st_ref, scores_ref,
):
    B, L, K = enc_ref.shape
    V, E = emb_ref.shape
    H = st_ref.shape[-1]

    s_prev = s_prev_ref[...]                          # [B, H] f32
    s_prev_bf = s_prev.astype(jnp.bfloat16)

    # ---------------- embedding lookup (one-hot matmul, resident table) -----
    ids = y_ref[...]                                  # [B, 1] int32
    iota_v = jax.lax.broadcasted_iota(jnp.int32, (B, V), 1)
    onehot = (iota_v == ids).astype(jnp.bfloat16)     # [B, V]
    y_emb = jnp.dot(onehot, emb_ref[...],
                    preferred_element_type=jnp.float32)   # [B, E] f32 (exact bf16 rows)
    y_emb_bf = y_emb.astype(jnp.bfloat16)

    # ---------------- additive (Bahdanau) attention --------------------------
    # keys = enc @ Wa_h + ba was precomputed once per sequence (step-invariant).
    t_s = jnp.dot(s_prev_bf, wa_s_ref[...],
                  preferred_element_type=jnp.float32)     # [B, A]
    energy = jnp.tanh(t_s[:, None, :] + keys_ref[...])    # [B, L, A] f32
    e = jnp.sum(energy * va_ref[...][None], axis=-1)      # [B, L]
    e = jnp.where(mask_ref[...] > 0.0, e, -1e10)
    e_max = jnp.max(e, axis=-1, keepdims=True)
    p = jnp.exp(e - e_max)
    scores = p * pl.reciprocal(jnp.sum(p, axis=-1, keepdims=True), approx=True)
    scores_ref[...] = scores
    context = jnp.sum(scores[:, :, None] * enc_ref[...], axis=1)   # [B, K] f32
    context_bf = context.astype(jnp.bfloat16)

    # ---------------- 2-layer GRU, single time step ---------------------------
    # Gate weights are pre-merged to [in, 3H] (PyTorch gate order r, z, n).
    def gru_gates(gi, gh, h, bih, bhh):
        gi = gi + bih
        gh = gh + bhh
        r = jax.nn.sigmoid(gi[:, :H] + gh[:, :H])
        z = jax.nn.sigmoid(gi[:, H:2 * H] + gh[:, H:2 * H])
        n = jnp.tanh(gi[:, 2 * H:] + r * gh[:, 2 * H:])
        return (1.0 - z) * n + z * h

    # layer 0: x0 = [y_emb ; context] via split-accumulate (no lane concat)
    gi0 = (jnp.dot(y_emb_bf, wih0e_ref[...], preferred_element_type=jnp.float32)
           + jnp.dot(context_bf, wih0c_ref[...], preferred_element_type=jnp.float32))
    gh0 = jnp.dot(s_prev_bf, whh0_ref[...], preferred_element_type=jnp.float32)
    h0 = gru_gates(gi0, gh0, s_prev, bih0_ref[...], bhh0_ref[...])

    # layer 1: input = h0, hidden init = s_prev (matches repeat(2,1,1))
    h0_bf = h0.astype(jnp.bfloat16)
    gi1 = jnp.dot(h0_bf, wih1_ref[...], preferred_element_type=jnp.float32)
    gh1 = jnp.dot(s_prev_bf, whh1_ref[...], preferred_element_type=jnp.float32)
    h1 = gru_gates(gi1, gh1, s_prev, bih1_ref[...], bhh1_ref[...])
    st_ref[...] = h1

    # ---------------- prediction head: Linear + LogSoftmax --------------------
    # zcat @ W_pred computed as split-accumulate over the three input pieces.
    logits = (jnp.dot(y_emb_bf, wpe_ref[...], preferred_element_type=jnp.float32)
              + jnp.dot(context_bf, wpc_ref[...], preferred_element_type=jnp.float32)
              + jnp.dot(h1.astype(jnp.bfloat16), wph_ref[...],
                        preferred_element_type=jnp.float32)
              + bp_ref[...])
    m = jnp.max(logits, axis=-1, keepdims=True)
    shifted = logits - m
    lse = jnp.log(jnp.sum(jnp.exp(shifted), axis=-1, keepdims=True))
    logp_ref[...] = shifted - lse


# --------------------------------------------------------------------------
# Host-side helpers
# --------------------------------------------------------------------------
def pack_params(params):
    """Canonical (PyTorch-layout) params -> kernel layout.

    Gate weights merged to [in, 3H] (and split by input piece for layer 0),
    prediction weight split by input piece; matmul weights cast to bf16.
    Done ONCE, outside the per-step path.
    """
    bf = jnp.bfloat16
    E = params["embedding"].shape[1]
    K = params["wa_h"].shape[0]

    def merge_w(w3):   # [3, in, H] -> [in, 3H]
        return jnp.concatenate([w3[0], w3[1], w3[2]], axis=-1)

    def merge_b(b3):   # [3, 1, H] -> [1, 3H]
        return jnp.concatenate([b3[0], b3[1], b3[2]], axis=-1)

    wih0 = merge_w(params["w_ih0"])            # [E+K, 3H]
    wp = params["w_pred"]                      # [E+K+H, V]
    return {
        "emb": params["embedding"].astype(bf),
        "wa_s": params["wa_s"].astype(bf),
        "wa_h": params["wa_h"],                # f32; used once in prepare_encoder
        "ba": params["ba"],
        "va": params["va"],                    # f32; elementwise reduce in-kernel
        "w_ih0_e": wih0[:E].astype(bf),
        "w_ih0_c": wih0[E:].astype(bf),
        "w_hh0": merge_w(params["w_hh0"]).astype(bf),
        "b_ih0": merge_b(params["b_ih0"]),
        "b_hh0": merge_b(params["b_hh0"]),
        "w_ih1": merge_w(params["w_ih1"]).astype(bf),
        "w_hh1": merge_w(params["w_hh1"]).astype(bf),
        "b_ih1": merge_b(params["b_ih1"]),
        "b_hh1": merge_b(params["b_hh1"]),
        "w_pred_e": wp[:E].astype(bf),
        "w_pred_c": wp[E:E + K].astype(bf),
        "w_pred_h": wp[E + K:].astype(bf),
        "b_pred": params["b_pred"],
    }


def prepare_encoder(encoder_outputs, kparams):
    """Per-sequence (step-invariant) precompute: batch-major enc + attention keys."""
    enc = jnp.transpose(encoder_outputs, (1, 0, 2)).astype(jnp.float32)      # [B, L, K]
    keys = (jnp.einsum("blk,ka->bla", enc, kparams["wa_h"])
            + kparams["ba"][None]).astype(jnp.float32)                       # [B, L, A]
    return enc, keys


def decoder_step(y_t, s_prev, enc, keys, mask, kparams):
    """One decode step on precomputed (enc [B,L,K], keys [B,L,A])."""
    B, L, _ = enc.shape
    H = s_prev.shape[-1]
    V, _ = kparams["emb"].shape

    args = (
        y_t.astype(jnp.int32).reshape(B, 1),
        s_prev.astype(jnp.float32),
        enc, keys, mask.astype(jnp.float32),
        kparams["emb"], kparams["wa_s"], kparams["va"],
        kparams["w_ih0_e"], kparams["w_ih0_c"], kparams["w_hh0"],
        kparams["b_ih0"], kparams["b_hh0"],
        kparams["w_ih1"], kparams["w_hh1"], kparams["b_ih1"], kparams["b_hh1"],
        kparams["w_pred_e"], kparams["w_pred_c"], kparams["w_pred_h"],
        kparams["b_pred"],
    )
    vmem = pl.BlockSpec(memory_space=pltpu.MemorySpace.VMEM)
    logp, s_t, scores = pl.pallas_call(
        _decoder_step_kernel,
        out_shape=(
            jax.ShapeDtypeStruct((B, V), jnp.float32),
            jax.ShapeDtypeStruct((B, H), jnp.float32),
            jax.ShapeDtypeStruct((B, L), jnp.float32),
        ),
        in_specs=[vmem] * len(args),
        out_specs=(vmem, vmem, vmem),
    )(*args)
    return logp, s_t, scores


# --------------------------------------------------------------------------
# Pure-JAX f32 reference (canonical params), mirroring the PyTorch forward
# --------------------------------------------------------------------------
def decoder_step_ref(y_t, s_prev, encoder_outputs, mask, params):
    y_emb = params["embedding"][y_t]
    enc = jnp.transpose(encoder_outputs, (1, 0, 2))
    t_s = s_prev @ params["wa_s"]
    t_h = jnp.einsum("blk,ka->bla", enc, params["wa_h"])
    energy = jnp.tanh(t_s[:, None, :] + t_h + params["ba"][None])
    e = jnp.sum(energy * params["va"][None], axis=-1)
    e = jnp.where(mask > 0, e, -1e10)
    scores = jax.nn.softmax(e, axis=-1)
    context = jnp.einsum("bl,blk->bk", scores, enc)

    def gru_cell(x, h, wih, whh, bih, bhh):
        r = jax.nn.sigmoid(x @ wih[0] + bih[0] + h @ whh[0] + bhh[0])
        z = jax.nn.sigmoid(x @ wih[1] + bih[1] + h @ whh[1] + bhh[1])
        n = jnp.tanh(x @ wih[2] + bih[2] + r * (h @ whh[2] + bhh[2]))
        return (1.0 - z) * n + z * h

    x0 = jnp.concatenate([y_emb, context], axis=-1)
    h0 = gru_cell(x0, s_prev, params["w_ih0"], params["w_hh0"],
                  params["b_ih0"], params["b_hh0"])
    h1 = gru_cell(h0, s_prev, params["w_ih1"], params["w_hh1"],
                  params["b_ih1"], params["b_hh1"])
    zcat = jnp.concatenate([y_emb, context, h1], axis=-1)
    logits = zcat @ params["w_pred"] + params["b_pred"]
    return jax.nn.log_softmax(logits, axis=-1), h1, scores


def init_params(key, *, vocab, emb_dim, enc_hidden, dec_hidden, attn_dim):
    K = 2 * enc_hidden
    rnn_in = emb_dim + K
    pred_in = emb_dim + K + dec_hidden
    keys = jax.random.split(key, 15)

    def w(k, shape, scale=0.1):
        return (scale * jax.random.normal(k, shape)).astype(jnp.float32)

    return {
        "embedding": w(keys[0], (vocab, emb_dim)),
        "wa_s": w(keys[1], (dec_hidden, attn_dim)),
        "wa_h": w(keys[2], (K, attn_dim)),
        "ba": w(keys[3], (1, attn_dim)),
        "va": w(keys[4], (1, attn_dim)),
        "w_ih0": w(keys[5], (3, rnn_in, dec_hidden)),
        "w_hh0": w(keys[6], (3, dec_hidden, dec_hidden)),
        "b_ih0": w(keys[7], (3, 1, dec_hidden)),
        "b_hh0": w(keys[8], (3, 1, dec_hidden)),
        "w_ih1": w(keys[9], (3, dec_hidden, dec_hidden)),
        "w_hh1": w(keys[10], (3, dec_hidden, dec_hidden)),
        "b_ih1": w(keys[11], (3, 1, dec_hidden)),
        "b_hh1": w(keys[12], (3, 1, dec_hidden)),
        "w_pred": w(keys[13], (pred_in, vocab)),
        "b_pred": w(keys[14], (1, vocab)),
    }


if __name__ == "__main__":
    B, L = 8, 16                 # batch, source length
    V, E = 128, 32               # vocab (input_dim), embedding_dim
    ENC_H, DEC_H, ATTN = 32, 64, 64
    K = 2 * ENC_H                # encoder_outputs feature dim

    root = jax.random.PRNGKey(0)
    kp, k1, k2, k3 = jax.random.split(root, 4)
    params = init_params(kp, vocab=V, emb_dim=E, enc_hidden=ENC_H,
                         dec_hidden=DEC_H, attn_dim=ATTN)
    kparams = pack_params(params)

    y_t = jax.random.randint(k1, (B,), 0, V).astype(jnp.int32)                      # [B]
    s_prev = (0.1 * jax.random.normal(k2, (B, DEC_H))).astype(jnp.float32)          # [B, H]
    encoder_outputs = (0.1 * jax.random.normal(k3, (L, B, K))).astype(jnp.float32)  # [L, B, K]
    lengths = jnp.array([16, 14, 12, 10, 9, 8, 6, 5], dtype=jnp.int32)
    mask = (jnp.arange(L)[None, :] < lengths[:, None]).astype(jnp.float32)          # [B, L]

    # Step-invariant precompute (once per source sequence).
    enc, attn_keys = prepare_encoder(encoder_outputs, kparams)

    logp, s_t, scores = decoder_step(y_t, s_prev, enc, attn_keys, mask, kparams)
    jax.block_until_ready((logp, s_t, scores))

    ref_logp, ref_st, ref_scores = decoder_step_ref(
        y_t, s_prev, encoder_outputs, mask, params)

    assert logp.shape == (B, V) and s_t.shape == (B, DEC_H) and scores.shape == (B, L)
    assert jnp.allclose(logp, ref_logp, atol=2e-2, rtol=2e-2)
    assert jnp.allclose(s_t, ref_st, atol=2e-2, rtol=2e-2)
    assert jnp.allclose(scores, ref_scores, atol=2e-2, rtol=2e-2)
    # sanity: log-probabilities normalize and masked positions get no attention
    assert jnp.allclose(jnp.sum(jnp.exp(logp), axis=-1), 1.0, atol=1e-3)
    assert jnp.all(jnp.where(mask > 0, 0.0, scores) < 1e-6)
    print("KERNEL_OK")
</pallas_src>

<mosaic_0001>
module attributes {stable_mosaic.version = 11 : i64} {
  func.func @_decoder_step_kernel(%arg0: memref<8x1xi32, #tpu.memory_space<vmem>>, %arg1: memref<8x64xf32, #tpu.memory_space<vmem>>, %arg2: memref<8x16x64xf32, #tpu.memory_space<vmem>>, %arg3: memref<8x16x64xf32, #tpu.memory_space<vmem>>, %arg4: memref<8x16xf32, #tpu.memory_space<vmem>>, %arg5: memref<128x32xbf16, #tpu.memory_space<vmem>>, %arg6: memref<64x64xbf16, #tpu.memory_space<vmem>>, %arg7: memref<1x64xf32, #tpu.memory_space<vmem>>, %arg8: memref<32x192xbf16, #tpu.memory_space<vmem>>, %arg9: memref<64x192xbf16, #tpu.memory_space<vmem>>, %arg10: memref<64x192xbf16, #tpu.memory_space<vmem>>, %arg11: memref<1x192xf32, #tpu.memory_space<vmem>>, %arg12: memref<1x192xf32, #tpu.memory_space<vmem>>, %arg13: memref<64x192xbf16, #tpu.memory_space<vmem>>, %arg14: memref<64x192xbf16, #tpu.memory_space<vmem>>, %arg15: memref<1x192xf32, #tpu.memory_space<vmem>>, %arg16: memref<1x192xf32, #tpu.memory_space<vmem>>, %arg17: memref<32x128xbf16, #tpu.memory_space<vmem>>, %arg18: memref<64x128xbf16, #tpu.memory_space<vmem>>, %arg19: memref<64x128xbf16, #tpu.memory_space<vmem>>, %arg20: memref<1x128xf32, #tpu.memory_space<vmem>>, %arg21: memref<8x128xf32, #tpu.memory_space<vmem>>, %arg22: memref<8x64xf32, #tpu.memory_space<vmem>>, %arg23: memref<8x16xf32, #tpu.memory_space<vmem>>) attributes {dimension_semantics = [], scalar_prefetch = 0 : i64, scratch_operands = 0 : i64, tpu.core_type = #tpu.core_type<tc>} {
    %c0 = arith.constant 0 : index
    %c0_0 = arith.constant 0 : index
    %0 = vector.load %arg1[%c0, %c0_0] : memref<8x64xf32, #tpu.memory_space<vmem>>, vector<8x64xf32>
    %1 = arith.truncf %0 : vector<8x64xf32> to vector<8x64xbf16>
    %c0_1 = arith.constant 0 : index
    %c0_2 = arith.constant 0 : index
    %2 = vector.load %arg0[%c0_1, %c0_2] : memref<8x1xi32, #tpu.memory_space<vmem>>, vector<8x1xi32>
    %3 = tpu.iota {dimensions = array<i32: 1>} : vector<8x128xi32>
    %4 = vector.broadcast %2 : vector<8x1xi32> to vector<8x128xi32>
    %5 = arith.cmpi eq, %3, %4 : vector<8x128xi32>
    %6 = arith.extui %5 : vector<8x128xi1> to vector<8x128xi32>
    %7 = arith.sitofp %6 : vector<8x128xi32> to vector<8x128xf32>
    %8 = arith.truncf %7 : vector<8x128xf32> to vector<8x128xbf16>
    %c0_3 = arith.constant 0 : index
    %c0_4 = arith.constant 0 : index
    %9 = vector.load %arg5[%c0_3, %c0_4] : memref<128x32xbf16, #tpu.memory_space<vmem>>, vector<128x32xbf16>
    %cst = arith.constant dense<0.000000e+00> : vector<8x32xf32>
    %10 = tpu.matmul %8, %9, %cst {dimension_numbers = #tpu.dot_dimension_numbers<[1], [0], [0], [1], [0, 0, 1, 1], [], []>} : vector<8x128xbf16>, vector<128x32xbf16>, vector<8x32xf32> -> vector<8x32xf32>
    %11 = arith.truncf %10 : vector<8x32xf32> to vector<8x32xbf16>
    %c0_5 = arith.constant 0 : index
    %c0_6 = arith.constant 0 : index
    %12 = vector.load %arg6[%c0_5, %c0_6] : memref<64x64xbf16, #tpu.memory_space<vmem>>, vector<64x64xbf16>
    %cst_7 = arith.constant dense<0.000000e+00> : vector<8x64xf32>
    %13 = tpu.matmul %1, %12, %cst_7 {dimension_numbers = #tpu.dot_dimension_numbers<[1], [0], [0], [1], [0, 0, 1, 1], [], []>} : vector<8x64xbf16>, vector<64x64xbf16>, vector<8x64xf32> -> vector<8x64xf32>
    %14 = vector.shape_cast %13 : vector<8x64xf32> to vector<8x1x64xf32>
    %c0_8 = arith.constant 0 : index
    %c0_9 = arith.constant 0 : index
    %c0_10 = arith.constant 0 : index
    %15 = vector.load %arg3[%c0_8, %c0_9, %c0_10] : memref<8x16x64xf32, #tpu.memory_space<vmem>>, vector<8x16x64xf32>
    %16 = vector.broadcast %14 : vector<8x1x64xf32> to vector<8x16x64xf32>
    %17 = arith.addf %16, %15 : vector<8x16x64xf32>
    %18 = math.tanh %17 : vector<8x16x64xf32>
    %c0_11 = arith.constant 0 : index
    %c0_12 = arith.constant 0 : index
    %19 = vector.load %arg7[%c0_11, %c0_12] : memref<1x64xf32, #tpu.memory_space<vmem>>, vector<1x64xf32>
    %20 = vector.shape_cast %19 : vector<1x64xf32> to vector<1x1x64xf32>
    %21 = vector.broadcast %20 : vector<1x1x64xf32> to vector<8x16x64xf32>
    %22 = arith.mulf %18, %21 : vector<8x16x64xf32>
    %cst_13 = arith.constant dense<0.000000e+00> : vector<8x16xf32>
    %23 = vector.multi_reduction <add>, %22, %cst_13 [2] : vector<8x16x64xf32> to vector<8x16xf32>
    %c0_14 = arith.constant 0 : index
    %c0_15 = arith.constant 0 : index
    %24 = vector.load %arg4[%c0_14, %c0_15] : memref<8x16xf32, #tpu.memory_space<vmem>>, vector<8x16xf32>
    %cst_16 = arith.constant 0.000000e+00 : f32
    %25 = vector.broadcast %cst_16 : f32 to vector<8x16xf32>
    %26 = arith.cmpf ogt, %24, %25 : vector<8x16xf32>
    %cst_17 = arith.constant -1.000000e+10 : f32
    %27 = vector.broadcast %cst_17 : f32 to vector<8x16xf32>
    %28 = arith.select %26, %23, %27 : vector<8x16xi1>, vector<8x16xf32>
    %cst_18 = arith.constant dense<0xFF800000> : vector<8xf32>
    %29 = vector.multi_reduction <maximumf>, %28, %cst_18 [1] : vector<8x16xf32> to vector<8xf32>
    %30 = vector.shape_cast %29 : vector<8xf32> to vector<8x1xf32>
    %31 = vector.broadcast %30 : vector<8x1xf32> to vector<8x16xf32>
    %32 = arith.subf %28, %31 : vector<8x16xf32>
    %33 = math.exp %32 : vector<8x16xf32>
    %cst_19 = arith.constant dense<0.000000e+00> : vector<8xf32>
    %34 = vector.multi_reduction <add>, %33, %cst_19 [1] : vector<8x16xf32> to vector<8xf32>
    %35 = vector.shape_cast %34 : vector<8xf32> to vector<8x1xf32>
    %36 = tpu.reciprocal %35 {approx = true} : vector<8x1xf32> -> vector<8x1xf32>
    %37 = vector.broadcast %36 : vector<8x1xf32> to vector<8x16xf32>
    %38 = arith.mulf %33, %37 : vector<8x16xf32>
    %c0_20 = arith.constant 0 : index
    %c0_21 = arith.constant 0 : index
    %39 = vector.load %arg23[%c0_20, %c0_21] : memref<8x16xf32, #tpu.memory_space<vmem>>, vector<8x16xf32>
    tpu.vector_store %arg23[%c0_20, %c0_21], %38 {strides = array<i32>} : memref<8x16xf32, #tpu.memory_space<vmem>>, vector<8x16xf32>,
    %40 = vector.shape_cast %38 : vector<8x16xf32> to vector<8x16x1xf32>
    %c0_22 = arith.constant 0 : index
    %c0_23 = arith.constant 0 : index
    %c0_24 = arith.constant 0 : index
    %41 = vector.load %arg2[%c0_22, %c0_23, %c0_24] : memref<8x16x64xf32, #tpu.memory_space<vmem>>, vector<8x16x64xf32>
    %42 = vector.broadcast %40 : vector<8x16x1xf32> to vector<8x16x64xf32>
    %43 = arith.mulf %42, %41 : vector<8x16x64xf32>
    %cst_25 = arith.constant dense<0.000000e+00> : vector<8x64xf32>
    %44 = vector.multi_reduction <add>, %43, %cst_25 [1] : vector<8x16x64xf32> to vector<8x64xf32>
    %45 = arith.truncf %44 : vector<8x64xf32> to vector<8x64xbf16>
    %c0_26 = arith.constant 0 : index
    %c0_27 = arith.constant 0 : index
    %46 = vector.load %arg8[%c0_26, %c0_27] : memref<32x192xbf16, #tpu.memory_space<vmem>>, vector<32x192xbf16>
    %cst_28 = arith.constant dense<0.000000e+00> : vector<8x192xf32>
    %47 = tpu.matmul %11, %46, %cst_28 {dimension_numbers = #tpu.dot_dimension_numbers<[1], [0], [0], [1], [0, 0, 1, 1], [], []>} : vector<8x32xbf16>, vector<32x192xbf16>, vector<8x192xf32> -> vector<8x192xf32>
    %c0_29 = arith.constant 0 : index
    %c0_30 = arith.constant 0 : index
    %48 = vector.load %arg9[%c0_29, %c0_30] : memref<64x192xbf16, #tpu.memory_space<vmem>>, vector<64x192xbf16>
    %cst_31 = arith.constant dense<0.000000e+00> : vector<8x192xf32>
    %49 = tpu.matmul %45, %48, %cst_31 {dimension_numbers = #tpu.dot_dimension_numbers<[1], [0], [0], [1], [0, 0, 1, 1], [], []>} : vector<8x64xbf16>, vector<64x192xbf16>, vector<8x192xf32> -> vector<8x192xf32>
    %50 = arith.addf %47, %49 : vector<8x192xf32>
    %c0_32 = arith.constant 0 : index
    %c0_33 = arith.constant 0 : index
    %51 = vector.load %arg10[%c0_32, %c0_33] : memref<64x192xbf16, #tpu.memory_space<vmem>>, vector<64x192xbf16>
    %cst_34 = arith.constant dense<0.000000e+00> : vector<8x192xf32>
    %52 = tpu.matmul %1, %51, %cst_34 {dimension_numbers = #tpu.dot_dimension_numbers<[1], [0], [0], [1], [0, 0, 1, 1], [], []>} : vector<8x64xbf16>, vector<64x192xbf16>, vector<8x192xf32> -> vector<8x192xf32>
    %c0_35 = arith.constant 0 : index
    %c0_36 = arith.constant 0 : index
    %53 = vector.load %arg11[%c0_35, %c0_36] : memref<1x192xf32, #tpu.memory_space<vmem>>, vector<1x192xf32>
    %c0_37 = arith.constant 0 : index
    %c0_38 = arith.constant 0 : index
    %54 = vector.load %arg12[%c0_37, %c0_38] : memref<1x192xf32, #tpu.memory_space<vmem>>, vector<1x192xf32>
    %55 = vector.broadcast %53 : vector<1x192xf32> to vector<8x192xf32>
    %56 = arith.addf %50, %55 : vector<8x192xf32>
    %57 = vector.broadcast %54 : vector<1x192xf32> to vector<8x192xf32>
    %58 = arith.addf %52, %57 : vector<8x192xf32>
    %59 = vector.extract_strided_slice %56 {offsets = [0, 0], sizes = [8, 64], strides = [1, 1]} : vector<8x192xf32> to vector<8x64xf32>
    %60 = vector.extract_strided_slice %58 {offsets = [0, 0], sizes = [8, 64], strides = [1, 1]} : vector<8x192xf32> to vector<8x64xf32>
    %61 = arith.addf %59, %60 : vector<8x64xf32>
    %62 = arith.negf %61 : vector<8x64xf32>
    %63 = math.exp %62 : vector<8x64xf32>
    %cst_39 = arith.constant 1.000000e+00 : f32
    %64 = vector.broadcast %cst_39 : f32 to vector<8x64xf32>
    %65 = arith.addf %64, %63 : vector<8x64xf32>
    %66 = arith.divf %64, %65 : vector<8x64xf32>
    %67 = vector.extract_strided_slice %56 {offsets = [0, 64], sizes = [8, 64], strides = [1, 1]} : vector<8x192xf32> to vector<8x64xf32>
    %68 = vector.extract_strided_slice %58 {offsets = [0, 64], sizes = [8, 64], strides = [1, 1]} : vector<8x192xf32> to vector<8x64xf32>
    %69 = arith.addf %67, %68 : vector<8x64xf32>
    %70 = arith.negf %69 : vector<8x64xf32>
    %71 = math.exp %70 : vector<8x64xf32>
    %cst_40 = arith.constant 1.000000e+00 : f32
    %72 = vector.broadcast %cst_40 : f32 to vector<8x64xf32>
    %73 = arith.addf %72, %71 : vector<8x64xf32>
    %74 = arith.divf %72, %73 : vector<8x64xf32>
    %75 = vector.extract_strided_slice %56 {offsets = [0, 128], sizes = [8, 64], strides = [1, 1]} : vector<8x192xf32> to vector<8x64xf32>
    %76 = vector.extract_strided_slice %58 {offsets = [0, 128], sizes = [8, 64], strides = [1, 1]} : vector<8x192xf32> to vector<8x64xf32>
    %77 = arith.mulf %66, %76 : vector<8x64xf32>
    %78 = arith.addf %75, %77 : vector<8x64xf32>
    %79 = math.tanh %78 : vector<8x64xf32>
    %cst_41 = arith.constant 1.000000e+00 : f32
    %80 = vector.broadcast %cst_41 : f32 to vector<8x64xf32>
    %81 = arith.subf %80, %74 : vector<8x64xf32>
    %82 = arith.mulf %81, %79 : vector<8x64xf32>
    %83 = arith.mulf %74, %0 : vector<8x64xf32>
    %84 = arith.addf %82, %83 : vector<8x64xf32>
    %85 = arith.truncf %84 : vector<8x64xf32> to vector<8x64xbf16>
    %c0_42 = arith.constant 0 : index
    %c0_43 = arith.constant 0 : index
    %86 = vector.load %arg13[%c0_42, %c0_43] : memref<64x192xbf16, #tpu.memory_space<vmem>>, vector<64x192xbf16>
    %cst_44 = arith.constant dense<0.000000e+00> : vector<8x192xf32>
    %87 = tpu.matmul %85, %86, %cst_44 {dimension_numbers = #tpu.dot_dimension_numbers<[1], [0], [0], [1], [0, 0, 1, 1], [], []>} : vector<8x64xbf16>, vector<64x192xbf16>, vector<8x192xf32> -> vector<8x192xf32>
    %c0_45 = arith.constant 0 : index
    %c0_46 = arith.constant 0 : index
    %88 = vector.load %arg14[%c0_45, %c0_46] : memref<64x192xbf16, #tpu.memory_space<vmem>>, vector<64x192xbf16>
    %cst_47 = arith.constant dense<0.000000e+00> : vector<8x192xf32>
    %89 = tpu.matmul %1, %88, %cst_47 {dimension_numbers = #tpu.dot_dimension_numbers<[1], [0], [0], [1], [0, 0, 1, 1], [], []>} : vector<8x64xbf16>, vector<64x192xbf16>, vector<8x192xf32> -> vector<8x192xf32>
    %c0_48 = arith.constant 0 : index
    %c0_49 = arith.constant 0 : index
    %90 = vector.load %arg15[%c0_48, %c0_49] : memref<1x192xf32, #tpu.memory_space<vmem>>, vector<1x192xf32>
    %c0_50 = arith.constant 0 : index
    %c0_51 = arith.constant 0 : index
    %91 = vector.load %arg16[%c0_50, %c0_51] : memref<1x192xf32, #tpu.memory_space<vmem>>, vector<1x192xf32>
    %92 = vector.broadcast %90 : vector<1x192xf32> to vector<8x192xf32>
    %93 = arith.addf %87, %92 : vector<8x192xf32>
    %94 = vector.broadcast %91 : vector<1x192xf32> to vector<8x192xf32>
    %95 = arith.addf %89, %94 : vector<8x192xf32>
    %96 = vector.extract_strided_slice %93 {offsets = [0, 0], sizes = [8, 64], strides = [1, 1]} : vector<8x192xf32> to vector<8x64xf32>
    %97 = vector.extract_strided_slice %95 {offsets = [0, 0], sizes = [8, 64], strides = [1, 1]} : vector<8x192xf32> to vector<8x64xf32>
    %98 = arith.addf %96, %97 : vector<8x64xf32>
    %99 = arith.negf %98 : vector<8x64xf32>
    %100 = math.exp %99 : vector<8x64xf32>
    %cst_52 = arith.constant 1.000000e+00 : f32
    %101 = vector.broadcast %cst_52 : f32 to vector<8x64xf32>
    %102 = arith.addf %101, %100 : vector<8x64xf32>
    %103 = arith.divf %101, %102 : vector<8x64xf32>
    %104 = vector.extract_strided_slice %93 {offsets = [0, 64], sizes = [8, 64], strides = [1, 1]} : vector<8x192xf32> to vector<8x64xf32>
    %105 = vector.extract_strided_slice %95 {offsets = [0, 64], sizes = [8, 64], strides = [1, 1]} : vector<8x192xf32> to vector<8x64xf32>
    %106 = arith.addf %104, %105 : vector<8x64xf32>
    %107 = arith.negf %106 : vector<8x64xf32>
    %108 = math.exp %107 : vector<8x64xf32>
    %cst_53 = arith.constant 1.000000e+00 : f32
    %109 = vector.broadcast %cst_53 : f32 to vector<8x64xf32>
    %110 = arith.addf %109, %108 : vector<8x64xf32>
    %111 = arith.divf %109, %110 : vector<8x64xf32>
    %112 = vector.extract_strided_slice %93 {offsets = [0, 128], sizes = [8, 64], strides = [1, 1]} : vector<8x192xf32> to vector<8x64xf32>
    %113 = vector.extract_strided_slice %95 {offsets = [0, 128], sizes = [8, 64], strides = [1, 1]} : vector<8x192xf32> to vector<8x64xf32>
    %114 = arith.mulf %103, %113 : vector<8x64xf32>
    %115 = arith.addf %112, %114 : vector<8x64xf32>
    %116 = math.tanh %115 : vector<8x64xf32>
    %cst_54 = arith.constant 1.000000e+00 : f32
    %117 = vector.broadcast %cst_54 : f32 to vector<8x64xf32>
    %118 = arith.subf %117, %111 : vector<8x64xf32>
    %119 = arith.mulf %118, %116 : vector<8x64xf32>
    %120 = arith.mulf %111, %0 : vector<8x64xf32>
    %121 = arith.addf %119, %120 : vector<8x64xf32>
    %c0_55 = arith.constant 0 : index
    %c0_56 = arith.constant 0 : index
    %122 = vector.load %arg22[%c0_55, %c0_56] : memref<8x64xf32, #tpu.memory_space<vmem>>, vector<8x64xf32>
    tpu.vector_store %arg22[%c0_55, %c0_56], %121 {strides = array<i32>} : memref<8x64xf32, #tpu.memory_space<vmem>>, vector<8x64xf32>,
    %c0_57 = arith.constant 0 : index
    %c0_58 = arith.constant 0 : index
    %123 = vector.load %arg17[%c0_57, %c0_58] : memref<32x128xbf16, #tpu.memory_space<vmem>>, vector<32x128xbf16>
    %cst_59 = arith.constant dense<0.000000e+00> : vector<8x128xf32>
    %124 = tpu.matmul %11, %123, %cst_59 {dimension_numbers = #tpu.dot_dimension_numbers<[1], [0], [0], [1], [0, 0, 1, 1], [], []>} : vector<8x32xbf16>, vector<32x128xbf16>, vector<8x128xf32> -> vector<8x128xf32>
    %c0_60 = arith.constant 0 : index
    %c0_61 = arith.constant 0 : index
    %125 = vector.load %arg18[%c0_60, %c0_61] : memref<64x128xbf16, #tpu.memory_space<vmem>>, vector<64x128xbf16>
    %cst_62 = arith.constant dense<0.000000e+00> : vector<8x128xf32>
    %126 = tpu.matmul %45, %125, %cst_62 {dimension_numbers = #tpu.dot_dimension_numbers<[1], [0], [0], [1], [0, 0, 1, 1], [], []>} : vector<8x64xbf16>, vector<64x128xbf16>, vector<8x128xf32> -> vector<8x128xf32>
    %127 = arith.addf %124, %126 : vector<8x128xf32>
    %128 = arith.truncf %121 : vector<8x64xf32> to vector<8x64xbf16>
    %c0_63 = arith.constant 0 : index
    %c0_64 = arith.constant 0 : index
    %129 = vector.load %arg19[%c0_63, %c0_64] : memref<64x128xbf16, #tpu.memory_space<vmem>>, vector<64x128xbf16>
    %cst_65 = arith.constant dense<0.000000e+00> : vector<8x128xf32>
    %130 = tpu.matmul %128, %129, %cst_65 {dimension_numbers = #tpu.dot_dimension_numbers<[1], [0], [0], [1], [0, 0, 1, 1], [], []>} : vector<8x64xbf16>, vector<64x128xbf16>, vector<8x128xf32> -> vector<8x128xf32>
    %131 = arith.addf %127, %130 : vector<8x128xf32>
    %c0_66 = arith.constant 0 : index
    %c0_67 = arith.constant 0 : index
    %132 = vector.load %arg20[%c0_66, %c0_67] : memref<1x128xf32, #tpu.memory_space<vmem>>, vector<1x128xf32>
    %133 = vector.broadcast %132 : vector<1x128xf32> to vector<8x128xf32>
    %134 = arith.addf %131, %133 : vector<8x128xf32>
    %cst_68 = arith.constant dense<0xFF800000> : vector<8xf32>
    %135 = vector.multi_reduction <maximumf>, %134, %cst_68 [1] : vector<8x128xf32> to vector<8xf32>
    %136 = vector.shape_cast %135 : vector<8xf32> to vector<8x1xf32>
    %137 = vector.broadcast %136 : vector<8x1xf32> to vector<8x128xf32>
    %138 = arith.subf %134, %137 : vector<8x128xf32>
    %139 = math.exp %138 : vector<8x128xf32>
    %cst_69 = arith.constant dense<0.000000e+00> : vector<8xf32>
    %140 = vector.multi_reduction <add>, %139, %cst_69 [1] : vector<8x128xf32> to vector<8xf32>
    %141 = vector.shape_cast %140 : vector<8xf32> to vector<8x1xf32>
    %142 = math.log %141 : vector<8x1xf32>
    %143 = vector.broadcast %142 : vector<8x1xf32> to vector<8x128xf32>
    %144 = arith.subf %138, %143 : vector<8x128xf32>
    %c0_70 = arith.constant 0 : index
    %c0_71 = arith.constant 0 : index
    %145 = vector.load %arg21[%c0_70, %c0_71] : memref<8x128xf32, #tpu.memory_space<vmem>>, vector<8x128xf32>
    tpu.vector_store %arg21[%c0_70, %c0_71], %144 {strides = array<i32>} : memref<8x128xf32, #tpu.memory_space<vmem>>, vector<8x128xf32>,
    return
  }
}

</mosaic_0001>

<llo_original>
// kernel: tpu_custom_call.1
$region0: #{tpu_custom_call.1}
  #allocation0 [shape = 'u32[]', space=smem, size = 0x4, offset = 0x4, fixed_abs, tag = 'smem constant byte address 0x4 - core index']
  #allocation1 [shape = 'u32[144,128]{1,0:T(1,128)}', space=vmem, size = 0x12000, scoped, tag = 'internal scratch']
  %s0 = inlined_call_operand.vmem [shape: s32[8,1], index: 0, kind: input, shape index: {}]
  %s1 = inlined_call_operand.hbm [shape: f32[8,64], index: 1, kind: input, shape index: {}]
  %s2 = inlined_call_operand.hbm [shape: f32[8,16,64], index: 2, kind: input, shape index: {}]
  %s3 = inlined_call_operand.hbm [shape: f32[8,16,64], index: 3, kind: input, shape index: {}]
  %s4 = inlined_call_operand.hbm [shape: f32[8,16], index: 4, kind: input, shape index: {}]
  %s5 = inlined_call_operand.vmem [shape: bf16[128,32], index: 5, kind: input, shape index: {}]
  %s6 = inlined_call_operand.hbm [shape: bf16[64,64], index: 6, kind: input, shape index: {}]
  %s7 = inlined_call_operand.hbm [shape: f32[1,64], index: 7, kind: input, shape index: {}]
  %s8 = inlined_call_operand.hbm [shape: bf16[32,192], index: 8, kind: input, shape index: {}]
  %s9 = inlined_call_operand.vmem [shape: bf16[64,192], index: 9, kind: input, shape index: {}]
  %s10 = inlined_call_operand.hbm [shape: bf16[64,192], index: 10, kind: input, shape index: {}]
  %s11 = inlined_call_operand.hbm [shape: f32[1,192], index: 11, kind: input, shape index: {}]
  %s12 = inlined_call_operand.hbm [shape: f32[1,192], index: 12, kind: input, shape index: {}]
  %s13 = inlined_call_operand.vmem [shape: bf16[64,192], index: 13, kind: input, shape index: {}]
  %s14 = inlined_call_operand.hbm [shape: bf16[64,192], index: 14, kind: input, shape index: {}]
  %s15 = inlined_call_operand.hbm [shape: f32[1,192], index: 15, kind: input, shape index: {}]
  %s16 = inlined_call_operand.hbm [shape: f32[1,192], index: 16, kind: input, shape index: {}]
  %s17 = inlined_call_operand.hbm [shape: bf16[32,128], index: 17, kind: input, shape index: {}]
  %s18 = inlined_call_operand.hbm [shape: bf16[64,128], index: 18, kind: input, shape index: {}]
  %s19 = inlined_call_operand.vmem [shape: bf16[64,128], index: 19, kind: input, shape index: {}]
  %s20 = inlined_call_operand.vmem [shape: f32[1,128], index: 20, kind: input, shape index: {}]
  %s21 = inlined_call_operand.hbm [shape: f32[8,128], index: 21, kind: output, shape index: {0}]
  %s22 = inlined_call_operand.hbm [shape: f32[8,64], index: 22, kind: output, shape index: {1}]
  %s23 = inlined_call_operand.hbm [shape: f32[8,16], index: 23, kind: output, shape index: {2}]
  %24 = xla_tuple %s21, %s22, %s23
  %s25 = sld [smem:[#allocation0]]
  $region170: #{tpu_custom_call.1} parent=0
    _
  %s27 = ssub.s32 1, %s25
  %s28 = scalar_select 0, %s27, %s25
  $region1: #{tpu_custom_call.1} parent=0
    #allocation2 [shape = 'u8[4096]{0}', space=vmem, size = 0x1000, scoped, tag = 'input window, operand 1, single buffered']
    #allocation3 [shape = 's32[1]{0}', space=sflag, size = 0x4, scoped, tag = 'scoped memory for tpu_custom_call.1']
    #allocation4 [shape = 's32[1]{0}', space=sflag, size = 0x4, scoped, tag = 'scoped memory for tpu_custom_call.1']
    #allocation5 [shape = 'u8[65536]{0}', space=vmem, size = 0x10000, scoped, tag = 'input window, operand 2, single buffered']
    #allocation6 [shape = 's32[1]{0}', space=sflag, size = 0x4, scoped, tag = 'scoped memory for tpu_custom_call.1']
    #allocation7 [shape = 'u8[65536]{0}', space=vmem, size = 0x10000, scoped, tag = 'input window, operand 3, single buffered']
    #allocation8 [shape = 'u8[4096]{0}', space=vmem, size = 0x1000, scoped, tag = 'input window, operand 4, single buffered']
    #allocation9 [shape = 's32[1]{0}', space=sflag, size = 0x4, scoped, tag = 'scoped memory for tpu_custom_call.1']
    #allocation10 [shape = 'u8[16384]{0}', space=vmem, size = 0x4000, scoped, tag = 'input window, operand 6, single buffered']
    #allocation11 [shape = 'u8[512]{0}', space=vmem, size = 0x400, scoped, tag = 'input window, operand 7, single buffered']
    #allocation12 [shape = 's32[1]{0}', space=sflag, size = 0x4, scoped, tag = 'scoped memory for tpu_custom_call.1']
    #allocation13 [shape = 'u8[16384]{0}', space=vmem, size = 0x4000, scoped, tag = 'input window, operand 8, single buffered']
    #allocation14 [shape = 'u8[32768]{0}', space=vmem, size = 0x8000, scoped, tag = 'input window, operand 10, single buffered']
    #allocation15 [shape = 's32[1]{0}', space=sflag, size = 0x4, scoped, tag = 'scoped memory for tpu_custom_call.1']
    #allocation16 [shape = 'u8[1024]{0}', space=vmem, size = 0x400, scoped, tag = 'input window, operand 11, single buffered']
    #allocation17 [shape = 'u8[1024]{0}', space=vmem, size = 0x400, scoped, tag = 'input window, operand 12, single buffered']
    #allocation18 [shape = 's32[1]{0}', space=sflag, size = 0x4, scoped, tag = 'scoped memory for tpu_custom_call.1']
    #allocation19 [shape = 'u8[32768]{0}', space=vmem, size = 0x8000, scoped, tag = 'input window, operand 14, single buffered']
    #allocation20 [shape = 'u8[1024]{0}', space=vmem, size = 0x400, scoped, tag = 'input window, operand 15, single buffered']
    #allocation21 [shape = 's32[1]{0}', space=sflag, size = 0x4, scoped, tag = 'scoped memory for tpu_custom_call.1']
    #allocation22 [shape = 'u8[1024]{0}', space=vmem, size = 0x400, scoped, tag = 'input window, operand 16, single buffered']
    #allocation23 [shape = 'u8[8192]{0}', space=vmem, size = 0x2000, scoped, tag = 'input window, operand 17, single buffered']
    #allocation24 [shape = 's32[1]{0}', space=sflag, size = 0x4, scoped, tag = 'scoped memory for tpu_custom_call.1']
    #allocation25 [shape = 'u8[16384]{0}', space=vmem, size = 0x4000, scoped, tag = 'input window, operand 18, single buffered']
    #allocation26 [shape = 'u8[4096]{0}', space=vmem, size = 0x1000, scoped, tag = 'output window, operand 0, single buffered']
    #allocation27 [shape = 'u8[4096]{0}', space=vmem, size = 0x1000, scoped, tag = 'output window, operand 1, single buffered']
    #allocation28 [shape = 's32[1]{0}', space=sflag, size = 0x4, scoped, tag = 'scoped memory for tpu_custom_call.1']
    #allocation29 [shape = 'u8[4096]{0}', space=vmem, size = 0x1000, scoped, tag = 'output window, operand 2, single buffered']
    %29 = vsyncpa [#allocation3], 0
    %30 = vsyncpa [#allocation6], 0
    %31 = vsyncpa [#allocation9], 0
    %32 = vsyncpa [#allocation12], 0
    %33 = vsyncpa [#allocation15], 0
    %34 = vsyncpa [#allocation18], 0
    %35 = vsyncpa [#allocation21], 0
    %36 = vsyncpa [#allocation24], 0
    %37 = vsyncpa [#allocation4], 0
    %38 = vsyncpa [#allocation28], 0
    // Predicated region
    $region2: #{tpu_custom_call.1} parent=1 // pred_check
      _
    $region3: #{tpu_custom_call.1} parent=1 // pred_check_branch
      %40 = sbr.rel (0) target = $region5
    $region4: #{tpu_custom_call.1} parent=1 // pred_region
      _
    $region5: #{tpu_custom_call.1} parent=1 // pred_fallthru
      _
    // Predicated region
    $region6: #{tpu_custom_call.1} parent=1 // pred_check
      _
    $region7: #{tpu_custom_call.1} parent=1 // pred_check_branch
      %42 = sbr.rel (0) target = $region9
    $region8: #{tpu_custom_call.1} parent=1 // pred_region
      %s44 = ssub.s32 128, 128
      %45 = vsyncadd [#allocation3], %s44
      %s47 = sshll.u32 [#allocation2], 4
      %s48 = int_to_ptr.vmem [resolvable:$true] %s47
      %50 = dma.hbm_to_vmem [thread:$0]  %s1, 128, %s48, [#allocation3]
    $region9: #{tpu_custom_call.1} parent=1 // pred_fallthru
      _
    // Predicated region
    $region10: #{tpu_custom_call.1} parent=1 // pred_check
      _
    $region11: #{tpu_custom_call.1} parent=1 // pred_check_branch
      %52 = sbr.rel (0) target = $region13
    $region12: #{tpu_custom_call.1} parent=1 // pred_region
      %s54 = ssub.s32 2048, 2048
      %55 = vsyncadd [#allocation6], %s54
      %s56 = sshll.u32 [#allocation5], 4
      %s57 = int_to_ptr.vmem [resolvable:$true] %s56
      %62 = dma.hbm_to_vmem [thread:$0]  %s2, 2048, %s57, [#allocation6], 128, 128, 8
    $region13: #{tpu_custom_call.1} parent=1 // pred_fallthru
      _
    // Predicated region
    $region14: #{tpu_custom_call.1} parent=1 // pred_check
      _
    $region15: #{tpu_custom_call.1} parent=1 // pred_check_branch
      %64 = sbr.rel (0) target = $region17
    $region16: #{tpu_custom_call.1} parent=1 // pred_region
      %s66 = ssub.s32 2048, 2048
      %67 = vsyncadd [#allocation6], %s66
      %s68 = sshll.u32 [#allocation7], 4
      %s69 = int_to_ptr.vmem [resolvable:$true] %s68
      %74 = dma.hbm_to_vmem [thread:$0]  %s3, 2048, %s69, [#allocation6], 128, 128, 8
    $region17: #{tpu_custom_call.1} parent=1 // pred_fallthru
      _
    // Predicated region
    $region18: #{tpu_custom_call.1} parent=1 // pred_check
      _
    $region19: #{tpu_custom_call.1} parent=1 // pred_check_branch
      %76 = sbr.rel (0) target = $region21
    $region20: #{tpu_custom_call.1} parent=1 // pred_region
      %s78 = ssub.s32 128, 128
      %79 = vsyncadd [#allocation9], %s78
      %s81 = sshll.u32 [#allocation8], 4
      %s82 = int_to_ptr.vmem [resolvable:$true] %s81
      %84 = dma.hbm_to_vmem [thread:$0]  %s4, 128, %s82, [#allocation9]
    $region21: #{tpu_custom_call.1} parent=1 // pred_fallthru
      _
    // Predicated region
    $region22: #{tpu_custom_call.1} parent=1 // pred_check
      _
    $region23: #{tpu_custom_call.1} parent=1 // pred_check_branch
      %86 = sbr.rel (0) target = $region25
    $region24: #{tpu_custom_call.1} parent=1 // pred_region
      _
    $region25: #{tpu_custom_call.1} parent=1 // pred_fallthru
      _
    // Predicated region
    $region26: #{tpu_custom_call.1} parent=1 // pred_check
      _
    $region27: #{tpu_custom_call.1} parent=1 // pred_check_branch
      %88 = sbr.rel (0) target = $region29
    $region28: #{tpu_custom_call.1} parent=1 // pred_region
      %s90 = ssub.s32 512, 512
      %91 = vsyncadd [#allocation9], %s90
      %s92 = sshll.u32 [#allocation10], 4
      %s93 = int_to_ptr.vmem [resolvable:$true] %s92
      %98 = dma.hbm_to_vmem [thread:$0]  %s6, 512, %s93, [#allocation9], 64, 64, 4
    $region29: #{tpu_custom_call.1} parent=1 // pred_fallthru
      _
    // Predicated region
    $region30: #{tpu_custom_call.1} parent=1 // pred_check
      _
    $region31: #{tpu_custom_call.1} parent=1 // pred_check_branch
      %100 = sbr.rel (0) target = $region33
    $region32: #{tpu_custom_call.1} parent=1 // pred_region
      %s102 = ssub.s32 16, 16
      %103 = vsyncadd [#allocation12], %s102
      %s105 = sshll.u32 [#allocation11], 4
      %s106 = int_to_ptr.vmem [resolvable:$true] %s105
      %108 = dma.hbm_to_vmem [thread:$0]  %s7, 16, %s106, [#allocation12]
    $region33: #{tpu_custom_call.1} parent=1 // pred_fallthru
      _
    // Predicated region
    $region34: #{tpu_custom_call.1} parent=1 // pred_check
      _
    $region35: #{tpu_custom_call.1} parent=1 // pred_check_branch
      %110 = sbr.rel (0) target = $region37
    $region36: #{tpu_custom_call.1} parent=1 // pred_region
      %s112 = ssub.s32 512, 512
      %113 = vsyncadd [#allocation12], %s112
      %s114 = sshll.u32 [#allocation13], 4
      %s115 = int_to_ptr.vmem [resolvable:$true] %s114
      %120 = dma.hbm_to_vmem [thread:$0]  %s8, 512, %s115, [#allocation12], 128, 128, 8
    $region37: #{tpu_custom_call.1} parent=1 // pred_fallthru
      _
    // Predicated region
    $region38: #{tpu_custom_call.1} parent=1 // pred_check
      _
    $region39: #{tpu_custom_call.1} parent=1 // pred_check_branch
      %122 = sbr.rel (0) target = $region41
    $region40: #{tpu_custom_call.1} parent=1 // pred_region
      _
    $region41: #{tpu_custom_call.1} parent=1 // pred_fallthru
      _
    // Predicated region
    $region42: #{tpu_custom_call.1} parent=1 // pred_check
      _
    $region43: #{tpu_custom_call.1} parent=1 // pred_check_branch
      %124 = sbr.rel (0) target = $region45
    $region44: #{tpu_custom_call.1} parent=1 // pred_region
      %s126 = ssub.s32 1024, 1024
      %127 = vsyncadd [#allocation15], %s126
      %s128 = sshll.u32 [#allocation14], 4
      %s129 = int_to_ptr.vmem [resolvable:$true] %s128
      %134 = dma.hbm_to_vmem [thread:$0]  %s10, 1024, %s129, [#allocation15], 128, 128, 8
    $region45: #{tpu_custom_call.1} parent=1 // pred_fallthru
      _
    // Predicated region
    $region46: #{tpu_custom_call.1} parent=1 // pred_check
      _
    $region47: #{tpu_custom_call.1} parent=1 // pred_check_branch
      %136 = sbr.rel (0) target = $region49
    $region48: #{tpu_custom_call.1} parent=1 // pred_region
      %s138 = ssub.s32 32, 32
      %139 = vsyncadd [#allocation15], %s138
      %s141 = sshll.u32 [#allocation16], 4
      %s142 = int_to_ptr.vmem [resolvable:$true] %s141
      %144 = dma.hbm_to_vmem [thread:$0]  %s11, 32, %s142, [#allocation15]
    $region49: #{tpu_custom_call.1} parent=1 // pred_fallthru
      _
    // Predicated region
    $region50: #{tpu_custom_call.1} parent=1 // pred_check
      _
    $region51: #{tpu_custom_call.1} parent=1 // pred_check_branch
      %146 = sbr.rel (0) target = $region53
    $region52: #{tpu_custom_call.1} parent=1 // pred_region
      %s148 = ssub.s32 32, 32
      %149 = vsyncadd [#allocation18], %s148
      %s151 = sshll.u32 [#allocation17], 4
      %s152 = int_to_ptr.vmem [resolvable:$true] %s151
      %154 = dma.hbm_to_vmem [thread:$0]  %s12, 32, %s152, [#allocation18]
    $region53: #{tpu_custom_call.1} parent=1 // pred_fallthru
      _
    // Predicated region
    $region54: #{tpu_custom_call.1} parent=1 // pred_check
      _
    $region55: #{tpu_custom_call.1} parent=1 // pred_check_branch
      %156 = sbr.rel (0) target = $region57
    $region56: #{tpu_custom_call.1} parent=1 // pred_region
      _
    $region57: #{tpu_custom_call.1} parent=1 // pred_fallthru
      _
    // Predicated region
    $region58: #{tpu_custom_call.1} parent=1 // pred_check
      _
    $region59: #{tpu_custom_call.1} parent=1 // pred_check_branch
      %158 = sbr.rel (0) target = $region61
    $region60: #{tpu_custom_call.1} parent=1 // pred_region
      %s160 = ssub.s32 1024, 1024
      %161 = vsyncadd [#allocation18], %s160
      %s162 = sshll.u32 [#allocation19], 4
      %s163 = int_to_ptr.vmem [resolvable:$true] %s162
      %168 = dma.hbm_to_vmem [thread:$0]  %s14, 1024, %s163, [#allocation18], 128, 128, 8
    $region61: #{tpu_custom_call.1} parent=1 // pred_fallthru
      _
    // Predicated region
    $region62: #{tpu_custom_call.1} parent=1 // pred_check
      _
    $region63: #{tpu_custom_call.1} parent=1 // pred_check_branch
      %170 = sbr.rel (0) target = $region65
    $region64: #{tpu_custom_call.1} parent=1 // pred_region
      %s172 = ssub.s32 32, 32
      %173 = vsyncadd [#allocation21], %s172
      %s175 = sshll.u32 [#allocation20], 4
      %s176 = int_to_ptr.vmem [resolvable:$true] %s175
      %178 = dma.hbm_to_vmem [thread:$0]  %s15, 32, %s176, [#allocation21]
    $region65: #{tpu_custom_call.1} parent=1 // pred_fallthru
      _
    // Predicated region
    $region66: #{tpu_custom_call.1} parent=1 // pred_check
      _
    $region67: #{tpu_custom_call.1} parent=1 // pred_check_branch
      %180 = sbr.rel (0) target = $region69
    $region68: #{tpu_custom_call.1} parent=1 // pred_region
      %s182 = ssub.s32 32, 32
      %183 = vsyncadd [#allocation21], %s182
      %s185 = sshll.u32 [#allocation22], 4
      %s186 = int_to_ptr.vmem [resolvable:$true] %s185
      %188 = dma.hbm_to_vmem [thread:$0]  %s16, 32, %s186, [#allocation21]
    $region69: #{tpu_custom_call.1} parent=1 // pred_fallthru
      _
    // Predicated region
    $region70: #{tpu_custom_call.1} parent=1 // pred_check
      _
    $region71: #{tpu_custom_call.1} parent=1 // pred_check_branch
      %190 = sbr.rel (0) target = $region73
    $region72: #{tpu_custom_call.1} parent=1 // pred_region
      %s192 = ssub.s32 256, 256
      %193 = vsyncadd [#allocation24], %s192
      %s194 = sshll.u32 [#allocation23], 4
      %s195 = int_to_ptr.vmem [resolvable:$true] %s194
      %200 = dma.hbm_to_vmem [thread:$0]  %s17, 256, %s195, [#allocation24], 64, 64, 4
    $region73: #{tpu_custom_call.1} parent=1 // pred_fallthru
      _
    // Predicated region
    $region74: #{tpu_custom_call.1} parent=1 // pred_check
      _
    $region75: #{tpu_custom_call.1} parent=1 // pred_check_branch
      %202 = sbr.rel (0) target = $region77
    $region76: #{tpu_custom_call.1} parent=1 // pred_region
      %s204 = ssub.s32 512, 512
      %205 = vsyncadd [#allocation24], %s204
      %s206 = sshll.u32 [#allocation25], 4
      %s207 = int_to_ptr.vmem [resolvable:$true] %s206
      %212 = dma.hbm_to_vmem [thread:$0]  %s18, 512, %s207, [#allocation24], 64, 64, 4
    $region77: #{tpu_custom_call.1} parent=1 // pred_fallthru
      _
    // Predicated region
    $region78: #{tpu_custom_call.1} parent=1 // pred_check
      _
    $region79: #{tpu_custom_call.1} parent=1 // pred_check_branch
      %214 = sbr.rel (0) target = $region81
    $region80: #{tpu_custom_call.1} parent=1 // pred_region
      _
    $region81: #{tpu_custom_call.1} parent=1 // pred_fallthru
      _
    // Predicated region
    $region82: #{tpu_custom_call.1} parent=1 // pred_check
      _
    $region83: #{tpu_custom_call.1} parent=1 // pred_check_branch
      %216 = sbr.rel (0) target = $region85
    $region84: #{tpu_custom_call.1} parent=1 // pred_region
      _
    $region85: #{tpu_custom_call.1} parent=1 // pred_fallthru
      _
    // Predicated region
    $region86: #{tpu_custom_call.1} parent=1 // pred_check
      _
    $region87: #{tpu_custom_call.1} parent=1 // pred_check_branch
      %218 = sbr.rel (0) target = $region89
    $region88: #{tpu_custom_call.1} parent=1 // pred_region
      %219 = dma.done [#allocation3], 128
    $region89: #{tpu_custom_call.1} parent=1 // pred_fallthru
      _
    // Predicated region
    $region90: #{tpu_custom_call.1} parent=1 // pred_check
      _
    $region91: #{tpu_custom_call.1} parent=1 // pred_check_branch
      %221 = sbr.rel (0) target = $region93
    $region92: #{tpu_custom_call.1} parent=1 // pred_region
      %222 = dma.done [#allocation6], 2048
    $region93: #{tpu_custom_call.1} parent=1 // pred_fallthru
      _
    // Predicated region
    $region94: #{tpu_custom_call.1} parent=1 // pred_check
      _
    $region95: #{tpu_custom_call.1} parent=1 // pred_check_branch
      %224 = sbr.rel (0) target = $region97
    $region96: #{tpu_custom_call.1} parent=1 // pred_region
      %225 = dma.done [#allocation6], 2048
    $region97: #{tpu_custom_call.1} parent=1 // pred_fallthru
      _
    // Predicated region
    $region98: #{tpu_custom_call.1} parent=1 // pred_check
      _
    $region99: #{tpu_custom_call.1} parent=1 // pred_check_branch
      %227 = sbr.rel (0) target = $region101
    $region100: #{tpu_custom_call.1} parent=1 // pred_region
      %228 = dma.done [#allocation9], 128
    $region101: #{tpu_custom_call.1} parent=1 // pred_fallthru
      _
    // Predicated region
    $region102: #{tpu_custom_call.1} parent=1 // pred_check
      _
    $region103: #{tpu_custom_call.1} parent=1 // pred_check_branch
      %230 = sbr.rel (0) target = $region105
    $region104: #{tpu_custom_call.1} parent=1 // pred_region
      %231 = dma.done [#allocation9], 512
    $region105: #{tpu_custom_call.1} parent=1 // pred_fallthru
      _
    // Predicated region
    $region106: #{tpu_custom_call.1} parent=1 // pred_check
      _
    $region107: #{tpu_custom_call.1} parent=1 // pred_check_branch
      %233 = sbr.rel (0) target = $region109
    $region108: #{tpu_custom_call.1} parent=1 // pred_region
      %234 = dma.done [#allocation12], 16
    $region109: #{tpu_custom_call.1} parent=1 // pred_fallthru
      _
    // Predicated region
    $region110: #{tpu_custom_call.1} parent=1 // pred_check
      _
    $region111: #{tpu_custom_call.1} parent=1 // pred_check_branch
      %236 = sbr.rel (0) target = $region113
    $region112: #{tpu_custom_call.1} parent=1 // pred_region
      %237 = dma.done [#allocation12], 512
    $region113: #{tpu_custom_call.1} parent=1 // pred_fallthru
      _
    // Predicated region
    $region114: #{tpu_custom_call.1} parent=1 // pred_check
      _
    $region115: #{tpu_custom_call.1} parent=1 // pred_check_branch
      %239 = sbr.rel (0) target = $region117
    $region116: #{tpu_custom_call.1} parent=1 // pred_region
      %240 = dma.done [#allocation15], 1024
    $region117: #{tpu_custom_call.1} parent=1 // pred_fallthru
      _
    // Predicated region
    $region118: #{tpu_custom_call.1} parent=1 // pred_check
      _
    $region119: #{tpu_custom_call.1} parent=1 // pred_check_branch
      %242 = sbr.rel (0) target = $region121
    $region120: #{tpu_custom_call.1} parent=1 // pred_region
      %243 = dma.done [#allocation15], 32
    $region121: #{tpu_custom_call.1} parent=1 // pred_fallthru
      _
    // Predicated region
    $region122: #{tpu_custom_call.1} parent=1 // pred_check
      _
    $region123: #{tpu_custom_call.1} parent=1 // pred_check_branch
      %245 = sbr.rel (0) target = $region125
    $region124: #{tpu_custom_call.1} parent=1 // pred_region
      %246 = dma.done [#allocation18], 32
    $region125: #{tpu_custom_call.1} parent=1 // pred_fallthru
      _
    // Predicated region
    $region126: #{tpu_custom_call.1} parent=1 // pred_check
      _
    $region127: #{tpu_custom_call.1} parent=1 // pred_check_branch
      %248 = sbr.rel (0) target = $region129
    $region128: #{tpu_custom_call.1} parent=1 // pred_region
      %249 = dma.done [#allocation18], 1024
    $region129: #{tpu_custom_call.1} parent=1 // pred_fallthru
      _
    // Predicated region
    $region130: #{tpu_custom_call.1} parent=1 // pred_check
      _
    $region131: #{tpu_custom_call.1} parent=1 // pred_check_branch
      %251 = sbr.rel (0) target = $region133
    $region132: #{tpu_custom_call.1} parent=1 // pred_region
      %252 = dma.done [#allocation21], 32
    $region133: #{tpu_custom_call.1} parent=1 // pred_fallthru
      _
    // Predicated region
    $region134: #{tpu_custom_call.1} parent=1 // pred_check
      _
    $region135: #{tpu_custom_call.1} parent=1 // pred_check_branch
      %254 = sbr.rel (0) target = $region137
    $region136: #{tpu_custom_call.1} parent=1 // pred_region
      %255 = dma.done [#allocation21], 32
    $region137: #{tpu_custom_call.1} parent=1 // pred_fallthru
      _
    // Predicated region
    $region138: #{tpu_custom_call.1} parent=1 // pred_check
      _
    $region139: #{tpu_custom_call.1} parent=1 // pred_check_branch
      %257 = sbr.rel (0) target = $region141
    $region140: #{tpu_custom_call.1} parent=1 // pred_region
      %258 = dma.done [#allocation24], 256
    $region141: #{tpu_custom_call.1} parent=1 // pred_fallthru
      _
    // Predicated region
    $region142: #{tpu_custom_call.1} parent=1 // pred_check
      _
    $region143: #{tpu_custom_call.1} parent=1 // pred_check_branch
      %260 = sbr.rel (0) target = $region145
    $region144: #{tpu_custom_call.1} parent=1 // pred_region
      %261 = dma.done [#allocation24], 512
    $region145: #{tpu_custom_call.1} parent=1 // pred_fallthru
      _
    %v263 = vld [vmem:[#allocation2] sm:$0xff]
    %v264 = vpack.c.bf16 %v263, %v263
    %v265 = vld [vmem:[%s0] sm:$0xff]
    %v266 = vlaneseq
    %v267 = vand.u32 %v266, 127
    %268 = vset.pattern.permute.xlu0 0
    %269 = vperm.xlu0 %268, %v265
    %v270 = vpop.permute.xlu0 %269
    %vm271 = vcmp.eq.s32.totalorder %v267, %v270
    %v272 = vsel %vm271, 1, 0
    %v273 = vcvt.s32.f32 %v272
    %v274 = vpack.c.bf16 %v273, %v273
    %v275 = vld [vmem:[%s5] sm:$0xf]
    %v276 = vld [vmem:[%s5 + $0x4] sm:$0xf]
    %v277 = vld [vmem:[%s5 + $0x8] sm:$0xf]
    %v278 = vld [vmem:[%s5 + $0xc] sm:$0xf]
    %v279 = vld [vmem:[%s5 + $0x10] sm:$0xf]
    %v280 = vld [vmem:[%s5 + $0x14] sm:$0xf]
    %v281 = vld [vmem:[%s5 + $0x18] sm:$0xf]
    %v282 = vld [vmem:[%s5 + $0x1c] sm:$0xf]
    %v283 = vld [vmem:[%s5 + $0x20] sm:$0xf]
    %v284 = vld [vmem:[%s5 + $0x24] sm:$0xf]
    %v285 = vld [vmem:[%s5 + $0x28] sm:$0xf]
    %v286 = vld [vmem:[%s5 + $0x2c] sm:$0xf]
    %v287 = vld [vmem:[%s5 + $0x30] sm:$0xf]
    %v288 = vld [vmem:[%s5 + $0x34] sm:$0xf]
    %v289 = vld [vmem:[%s5 + $0x38] sm:$0xf]
    %v290 = vld [vmem:[%s5 + $0x3c] sm:$0xf]
    %v307 = vunpack.c.l.b16 %v275
    %v308 = vunpack.c.l.b16 %v276
    %v309 = vunpack.c.l.b16 %v277
    %v310 = vunpack.c.l.b16 %v278
    %v311 = vunpack.c.l.b16 %v279
    %v312 = vunpack.c.l.b16 %v280
    %v313 = vunpack.c.l.b16 %v281
    %v314 = vunpack.c.l.b16 %v282
    %v315 = vunpack.c.l.b16 %v283
    %v316 = vunpack.c.l.b16 %v284
    %v317 = vunpack.c.l.b16 %v285
    %v318 = vunpack.c.l.b16 %v286
    %v319 = vunpack.c.l.b16 %v287
    %v320 = vunpack.c.l.b16 %v288
    %v321 = vunpack.c.l.b16 %v289
    %v322 = vunpack.c.l.b16 %v290
    %v323 = vpack.c.b16 %v308, %v307
    %v324 = vpack.c.b16 %v310, %v309
    %v325 = vpack.c.b16 %v312, %v311
    %v326 = vpack.c.b16 %v314, %v313
    %v327 = vpack.c.b16 %v316, %v315
    %v328 = vpack.c.b16 %v318, %v317
    %v329 = vpack.c.b16 %v320, %v319
    %v330 = vpack.c.b16 %v322, %v321
    %339 = vmatprep.subr.bf16.mxu0 0
    %340 = vmatpush1.bf16.msra.mxu0 %v323
    %341 = vmatprep.subr.bf16.mxu0 0
    %342 = vmatpush1.bf16.msra.mxu0 %v324
    %343 = vmatprep.subr.bf16.mxu0 0
    %344 = vmatpush1.bf16.msra.mxu0 %v325
    %345 = vmatprep.subr.bf16.mxu0 0
    %346 = vmatpush1.bf16.msra.mxu0 %v326
    %347 = vmatprep.subr.bf16.mxu0 0
    %348 = vmatpush1.bf16.msra.mxu0 %v327
    %349 = vmatprep.subr.bf16.mxu0 0
    %350 = vmatpush1.bf16.msra.mxu0 %v328
    %351 = vmatprep.subr.bf16.mxu0 0
    %352 = vmatpush1.bf16.msra.mxu0 %v329
    %353 = vmatprep.subr.bf16.mxu0 0
    %354 = vmatpush1.bf16.msra.mxu0 %v330
    %355 = vmatprep.subr.bf16.mxu0 0
    %356 = vmatpush1.bf16.msra.mxu0 0
    %357 = vmatprep.subr.bf16.mxu0 0
    %358 = vmatpush1.bf16.msra.mxu0 0
    %359 = vmatprep.subr.bf16.mxu0 0
    %360 = vmatpush1.bf16.msra.mxu0 0
    %361 = vmatprep.subr.bf16.mxu0 0
    %362 = vmatpush1.bf16.msra.mxu0 0
    %363 = vmatprep.subr.bf16.mxu0 0
    %364 = vmatpush1.bf16.msra.mxu0 0
    %365 = vmatprep.subr.bf16.mxu0 0
    %366 = vmatpush1.bf16.msra.mxu0 0
    %367 = vmatprep.subr.bf16.mxu0 0
    %368 = vmatpush1.bf16.msra.mxu0 0
    %369 = vmatprep.subr.bf16.mxu0 0
    %370 = vmatpush1.bf16.msra.mxu0 0
    %371 = vmatprep.mubr.bf16.mxu0 0
    %372 = vmatmul.mubr.bf16.gmra.mrb[0].mxu0 %v274
    %v373 = vpop.f32.mrb[0].mxu0
    %v374 = vadd.f32 0.0, %v373
    %v375 = vpop.f32.mrb[0].mxu0
    %v376 = vpop.f32.mrb[0].mxu0
    %v377 = vpop.f32.mrb[0].mxu0
    %378 = vdwg.mxu0
    %v379 = vpack.c.bf16 %v374, %v374
    %v380 = vld [vmem:[#allocation10] sm:$0xf]
    %v381 = vld [vmem:[#allocation10 + $0x4] sm:$0xf]
    %v382 = vld [vmem:[#allocation10 + $0x8] sm:$0xf]
    %v383 = vld [vmem:[#allocation10 + $0xc] sm:$0xf]
    %v384 = vld [vmem:[#allocation10 + $0x10] sm:$0xf]
    %v385 = vld [vmem:[#allocation10 + $0x14] sm:$0xf]
    %v386 = vld [vmem:[#allocation10 + $0x18] sm:$0xf]
    %v387 = vld [vmem:[#allocation10 + $0x1c] sm:$0xf]
    %v396 = vunpack.c.l.b16 %v380
    %v397 = vunpack.c.l.b16 %v381
    %v398 = vunpack.c.l.b16 %v382
    %v399 = vunpack.c.l.b16 %v383
    %v400 = vunpack.c.l.b16 %v384
    %v401 = vunpack.c.l.b16 %v385
    %v402 = vunpack.c.l.b16 %v386
    %v403 = vunpack.c.l.b16 %v387
    %v404 = vpack.c.b16 %v397, %v396
    %v405 = vpack.c.b16 %v399, %v398
    %v406 = vpack.c.b16 %v401, %v400
    %v407 = vpack.c.b16 %v403, %v402
    %vm412 = vcmask 523264
    %v414 = vsel %vm412, %v264, 0
    %416 = vmatprep.subr.bf16.mxu0 0
    %417 = vmatpush1.bf16.msra.mxu0 %v404
    %418 = vmatprep.subr.bf16.mxu0 0
    %419 = vmatpush1.bf16.msra.mxu0 %v405
    %420 = vmatprep.subr.bf16.mxu0 0
    %421 = vmatpush1.bf16.msra.mxu0 %v406
    %422 = vmatprep.subr.bf16.mxu0 0
    %423 = vmatpush1.bf16.msra.mxu0 %v407
    %424 = vmatprep.subr.bf16.mxu0 0
    %425 = vmatpush1.bf16.msra.mxu0 0
    %426 = vmatprep.subr.bf16.mxu0 0
    %427 = vmatpush1.bf16.msra.mxu0 0
    %428 = vmatprep.subr.bf16.mxu0 0
    %429 = vmatpush1.bf16.msra.mxu0 0
    %430 = vmatprep.subr.bf16.mxu0 0
    %431 = vmatpush1.bf16.msra.mxu0 0
    %432 = vmatprep.subr.bf16.mxu0 0
    %433 = vmatpush1.bf16.msra.mxu0 0
    %434 = vmatprep.subr.bf16.mxu0 0
    %435 = vmatpush1.bf16.msra.mxu0 0
    %436 = vmatprep.subr.bf16.mxu0 0
    %437 = vmatpush1.bf16.msra.mxu0 0
    %438 = vmatprep.subr.bf16.mxu0 0
    %439 = vmatpush1.bf16.msra.mxu0 0
    %440 = vmatprep.subr.bf16.mxu0 0
    %441 = vmatpush1.bf16.msra.mxu0 0
    %442 = vmatprep.subr.bf16.mxu0 0
    %443 = vmatpush1.bf16.msra.mxu0 0
    %444 = vmatprep.subr.bf16.mxu0 0
    %445 = vmatpush1.bf16.msra.mxu0 0
    %446 = vmatprep.subr.bf16.mxu0 0
    %447 = vmatpush1.bf16.msra.mxu0 0
    %448 = vmatprep.mubr.bf16.mxu0 0
    %449 = vmatmul.mubr.bf16.gmra.mrb[0].mxu0 %v414
    %v450 = vpop.f32.mrb[0].mxu0
    %v451 = vadd.f32 0.0, %v450
    %v452 = vpop.f32.mrb[0].mxu0
    %v453 = vpop.f32.mrb[0].mxu0
    %v454 = vpop.f32.mrb[0].mxu0
    %455 = vdwg.mxu0
    %v457 = vcombine.high %v451, %v451
    %v459 = vunpack.c.l.s4 1966171168
    %v460 = vunpack.c.0.s8 %v459
    %v461 = vlaneseq
    %v462 = vshrl.u32 %v461, 7
    %v463 = vsub.s32 %v460, %v462
    %v464 = vrot.slane %v451, %v463
    %v466 = vunpack.c.l.s4 1966171168
    %v467 = vunpack.c.0.s8 %v466
    %v468 = vlaneseq
    %v469 = vshrl.u32 %v468, 7
    %v470 = vsub.s32 %v467, %v469
    %v471 = vrot.slane %v457, %v470
    %v472 = vcombine.high %v464, %v464
    %v473 = vcombine.high %v471, %v471
    %v475 = vunpack.c.l.s4 1966171168
    %v476 = vunpack.c.0.s8 %v475
    %v477 = vlaneseq
    %v478 = vshrl.u32 %v477, 7
    %v479 = vsub.s32 %v476, %v478
    %v480 = vrot.slane %v464, %v479
    %v482 = vunpack.c.l.s4 1966171168
    %v483 = vunpack.c.0.s8 %v482
    %v484 = vlaneseq
    %v485 = vshrl.u32 %v484, 7
    %v486 = vsub.s32 %v483, %v485
    %v487 = vrot.slane %v471, %v486
    %v489 = vunpack.c.l.s4 1966171168
    %v490 = vunpack.c.0.s8 %v489
    %v491 = vlaneseq
    %v492 = vshrl.u32 %v491, 7
    %v493 = vsub.s32 %v490, %v492
    %v494 = vrot.slane %v472, %v493
    %v496 = vunpack.c.l.s4 1966171168
    %v497 = vunpack.c.0.s8 %v496
    %v498 = vlaneseq
    %v499 = vshrl.u32 %v498, 7
    %v500 = vsub.s32 %v497, %v499
    %v501 = vrot.slane %v473, %v500
    %v502 = vcombine.high %v480, %v480
    %v503 = vcombine.high %v487, %v487
    %v504 = vcombine.high %v494, %v494
    %v505 = vcombine.high %v501, %v501
    %v506 = vld [vmem:[#allocation7] sm:$0xff]
    %v507 = vld [vmem:[#allocation7 + $0x8] sm:$0xff]
    %v508 = vld [vmem:[#allocation7 + $0x10] sm:$0xff]
    %v509 = vld [vmem:[#allocation7 + $0x18] sm:$0xff]
    %v510 = vld [vmem:[#allocation7 + $0x20] sm:$0xff]
    %v511 = vld [vmem:[#allocation7 + $0x28] sm:$0xff]
    %v512 = vld [vmem:[#allocation7 + $0x30] sm:$0xff]
    %v513 = vld [vmem:[#allocation7 + $0x38] sm:$0xff]
    %v514 = vld [vmem:[#allocation7 + $0x40] sm:$0xff]
    %v515 = vld [vmem:[#allocation7 + $0x48] sm:$0xff]
    %v516 = vld [vmem:[#allocation7 + $0x50] sm:$0xff]
    %v517 = vld [vmem:[#allocation7 + $0x58] sm:$0xff]
    %v518 = vld [vmem:[#allocation7 + $0x60] sm:$0xff]
    %v519 = vld [vmem:[#allocation7 + $0x68] sm:$0xff]
    %v520 = vld [vmem:[#allocation7 + $0x70] sm:$0xff]
    %v521 = vld [vmem:[#allocation7 + $0x78] sm:$0xff]
    %v522 = vlaneseq
    %v523 = vshrl.u32 %v522, 7
    %v524 = vsub.s32 0, %v523
    %v525 = vrot.slane %v480, %v524
    %v526 = vlaneseq
    %v527 = vshrl.u32 %v526, 7
    %v528 = vsub.s32 0, %v527
    %v529 = vrot.slane %v494, %v528
    %v530 = vlaneseq
    %v531 = vshrl.u32 %v530, 7
    %v532 = vsub.s32 0, %v531
    %v533 = vrot.slane %v502, %v532
    %v534 = vlaneseq
    %v535 = vshrl.u32 %v534, 7
    %v536 = vsub.s32 0, %v535
    %v537 = vrot.slane %v504, %v536
    %v538 = vlaneseq
    %v539 = vshrl.u32 %v538, 7
    %v540 = vsub.s32 0, %v539
    %v541 = vrot.slane %v487, %v540
    %v542 = vlaneseq
    %v543 = vshrl.u32 %v542, 7
    %v544 = vsub.s32 0, %v543
    %v545 = vrot.slane %v501, %v544
    %v546 = vlaneseq
    %v547 = vshrl.u32 %v546, 7
    %v548 = vsub.s32 0, %v547
    %v549 = vrot.slane %v503, %v548
    %v550 = vlaneseq
    %v551 = vshrl.u32 %v550, 7
    %v552 = vsub.s32 0, %v551
    %v553 = vrot.slane %v505, %v552
    %v562 = vadd.f32 %v525, %v506
    %v563 = vadd.f32 %v525, %v507
    %v564 = vadd.f32 %v529, %v508
    %v565 = vadd.f32 %v529, %v509
    %v566 = vadd.f32 %v533, %v510
    %v567 = vadd.f32 %v533, %v511
    %v568 = vadd.f32 %v537, %v512
    %v569 = vadd.f32 %v537, %v513
    %v570 = vadd.f32 %v541, %v514
    %v571 = vadd.f32 %v541, %v515
    %v572 = vadd.f32 %v545, %v516
    %v573 = vadd.f32 %v545, %v517
    %v574 = vadd.f32 %v549, %v518
    %v575 = vadd.f32 %v549, %v519
    %v576 = vadd.f32 %v553, %v520
    %v577 = vadd.f32 %v553, %v521
    %v578 = vtanh.pop %v562
    %v579 = vtanh.pop %v563
    %v580 = vtanh.pop %v564
    %v581 = vtanh.pop %v565
    %v582 = vtanh.pop %v566
    %v583 = vtanh.pop %v567
    %v584 = vtanh.pop %v568
    %v585 = vtanh.pop %v569
    %v586 = vtanh.pop %v570
    %v587 = vtanh.pop %v571
    %v588 = vtanh.pop %v572
    %v589 = vtanh.pop %v573
    %v590 = vtanh.pop %v574
    %v591 = vtanh.pop %v575
    %v592 = vtanh.pop %v576
    %v593 = vtanh.pop %v577
    %v594 = vld [vmem:[#allocation11] sm:$0x1]
    %v596 = vlaneseq
    %v597 = vshrl.u32 %v596, 7
    %v598 = vsub.s32 0, %v597
    %v599 = vrot.slane %v594, %v598
    %v601 = vmul.f32 %v578, %v599
    %v602 = vmul.f32 %v579, %v599
    %v603 = vmul.f32 %v580, %v599
    %v604 = vmul.f32 %v581, %v599
    %v605 = vmul.f32 %v582, %v599
    %v606 = vmul.f32 %v583, %v599
    %v607 = vmul.f32 %v584, %v599
    %v608 = vmul.f32 %v585, %v599
    %v609 = vmul.f32 %v586, %v599
    %v610 = vmul.f32 %v587, %v599
    %v611 = vmul.f32 %v588, %v599
    %v612 = vmul.f32 %v589, %v599
    %v613 = vmul.f32 %v590, %v599
    %v614 = vmul.f32 %v591, %v599
    %v615 = vmul.f32 %v592, %v599
    %v616 = vmul.f32 %v593, %v599
    %v617 = vsel %vm412, %v601, 0.0
    %618 = vadd.xlane.f32.xlu0 %v617
    %v619 = vpop.xlane.xlu0 %618
    %v620 = vsel %vm412, %v602, 0.0
    %621 = vadd.xlane.f32.xlu0 %v620
    %v622 = vpop.xlane.xlu0 %621
    %v623 = vsel %vm412, %v603, 0.0
    %624 = vadd.xlane.f32.xlu0 %v623
    %v625 = vpop.xlane.xlu0 %624
    %v626 = vsel %vm412, %v604, 0.0
    %627 = vadd.xlane.f32.xlu0 %v626
    %v628 = vpop.xlane.xlu0 %627
    %v629 = vsel %vm412, %v605, 0.0
    %630 = vadd.xlane.f32.xlu0 %v629
    %v631 = vpop.xlane.xlu0 %630
    %v632 = vsel %vm412, %v606, 0.0
    %633 = vadd.xlane.f32.xlu0 %v632
    %v634 = vpop.xlane.xlu0 %633
    %v635 = vsel %vm412, %v607, 0.0
    %636 = vadd.xlane.f32.xlu0 %v635
    %v637 = vpop.xlane.xlu0 %636
    %v638 = vsel %vm412, %v608, 0.0
    %639 = vadd.xlane.f32.xlu0 %v638
    %v640 = vpop.xlane.xlu0 %639
    %v641 = vsel %vm412, %v609, 0.0
    %642 = vadd.xlane.f32.xlu0 %v641
    %v643 = vpop.xlane.xlu0 %642
    %v644 = vsel %vm412, %v610, 0.0
    %645 = vadd.xlane.f32.xlu0 %v644
    %v646 = vpop.xlane.xlu0 %645
    %v647 = vsel %vm412, %v611, 0.0
    %648 = vadd.xlane.f32.xlu0 %v647
    %v649 = vpop.xlane.xlu0 %648
    %v650 = vsel %vm412, %v612, 0.0
    %651 = vadd.xlane.f32.xlu0 %v650
    %v652 = vpop.xlane.xlu0 %651
    %v653 = vsel %vm412, %v613, 0.0
    %654 = vadd.xlane.f32.xlu0 %v653
    %v655 = vpop.xlane.xlu0 %654
    %v656 = vsel %vm412, %v614, 0.0
    %657 = vadd.xlane.f32.xlu0 %v656
    %v658 = vpop.xlane.xlu0 %657
    %v659 = vsel %vm412, %v615, 0.0
    %660 = vadd.xlane.f32.xlu0 %v659
    %v661 = vpop.xlane.xlu0 %660
    %v662 = vsel %vm412, %v616, 0.0
    %663 = vadd.xlane.f32.xlu0 %v662
    %v664 = vpop.xlane.xlu0 %663
    %v665 = vld [vmem:[#allocation8] sm:$0xff]
    %vm666 = vcmp.gt.f32.partialorder %v665, 0.0
    %v683 = vlaneseq
    %v684 = vshrl.u32 %v683, 7
    %v685 = vsub.s32 %v267, %v684
    %v686 = vrot.slane %v619, %v685
    %v687 = vadd.s32 %v267, 4294967288
    %v688 = vlaneseq
    %v689 = vshrl.u32 %v688, 7
    %v690 = vsub.s32 %v687, %v689
    %v691 = vrot.slane %v622, %v690
    %vm692 = vcmask 130112
    %v693 = vsel %vm692, %v691, %v686
    %v694 = vlaneseq
    %v695 = vshrl.u32 %v694, 7
    %v696 = vsub.s32 %v267, %v695
    %v697 = vrot.slane %v625, %v696
    %v698 = vlaneseq
    %v699 = vshrl.u32 %v698, 7
    %v700 = vsub.s32 %v687, %v699
    %v701 = vrot.slane %v628, %v700
    %v702 = vsel %vm692, %v701, %v697
    %v703 = vlaneseq
    %v704 = vshrl.u32 %v703, 7
    %v705 = vsub.s32 %v267, %v704
    %v706 = vrot.slane %v631, %v705
    %v707 = vlaneseq
    %v708 = vshrl.u32 %v707, 7
    %v709 = vsub.s32 %v687, %v708
    %v710 = vrot.slane %v634, %v709
    %v711 = vsel %vm692, %v710, %v706
    %v712 = vlaneseq
    %v713 = vshrl.u32 %v712, 7
    %v714 = vsub.s32 %v267, %v713
    %v715 = vrot.slane %v637, %v714
    %v716 = vlaneseq
    %v717 = vshrl.u32 %v716, 7
    %v718 = vsub.s32 %v687, %v717
    %v719 = vrot.slane %v640, %v718
    %v720 = vsel %vm692, %v719, %v715
    %v721 = vlaneseq
    %v722 = vshrl.u32 %v721, 7
    %v723 = vsub.s32 %v267, %v722
    %v724 = vrot.slane %v643, %v723
    %v725 = vlaneseq
    %v726 = vshrl.u32 %v725, 7
    %v727 = vsub.s32 %v687, %v726
    %v728 = vrot.slane %v646, %v727
    %v729 = vsel %vm692, %v728, %v724
    %v730 = vlaneseq
    %v731 = vshrl.u32 %v730, 7
    %v732 = vsub.s32 %v267, %v731
    %v733 = vrot.slane %v649, %v732
    %v734 = vlaneseq
    %v735 = vshrl.u32 %v734, 7
    %v736 = vsub.s32 %v687, %v735
    %v737 = vrot.slane %v652, %v736
    %v738 = vsel %vm692, %v737, %v733
    %v739 = vlaneseq
    %v740 = vshrl.u32 %v739, 7
    %v741 = vsub.s32 %v267, %v740
    %v742 = vrot.slane %v655, %v741
    %v743 = vlaneseq
    %v744 = vshrl.u32 %v743, 7
    %v745 = vsub.s32 %v687, %v744
    %v746 = vrot.slane %v658, %v745
    %v747 = vsel %vm692, %v746, %v742
    %v748 = vlaneseq
    %v749 = vshrl.u32 %v748, 7
    %v750 = vsub.s32 %v267, %v749
    %v751 = vrot.slane %v661, %v750
    %v752 = vlaneseq
    %v753 = vshrl.u32 %v752, 7
    %v754 = vsub.s32 %v687, %v753
    %v755 = vrot.slane %v664, %v754
    %v756 = vsel %vm692, %v755, %v751
    %vm757 = vcmask 1041409
    %v758 = vsel %vm757, %v702, %v693
    %vm759 = vcmask 1042434
    %v760 = vsel %vm759, %v711, %v758
    %vm761 = vcmask 1043459
    %v762 = vsel %vm761, %v720, %v760
    %vm763 = vcmask 1044484
    %v764 = vsel %vm763, %v729, %v762
    %vm765 = vcmask 1045509
    %v766 = vsel %vm765, %v738, %v764
    %vm767 = vcmask 1046534
    %v768 = vsel %vm767, %v747, %v766
    %vm769 = vcmask 1047559
    %v770 = vsel %vm769, %v756, %v768
    %v772 = vsel %vm666, %v770, -1e+10
    %vm773 = vcmask 130048
    %v774 = vsel %vm773, %v772, -inf
    %775 = vmax.xlane.f32.xlu0 %v774
    %v776 = vpop.xlane.xlu0 %775
    %v777 = vsub.f32 %v772, %v776
    %v778 = vmul.f32 %v777, 1.442695
    %v779 = vpow.pop %v778
    %v780 = vsel %vm773, %v779, 0.0
    %781 = vadd.xlane.f32.xlu0 %v780
    %v782 = vpop.xlane.xlu0 %781
    %v783 = vrcp.pop %v782
    %v784 = vmul.f32 %v779, %v783
    %785 = vst.msk [vmem:[#allocation29] sm:$0xff] %vm773, %v784
    %v786 = vlaneseq
    %v787 = vshrl.u32 %v786, 7
    %v788 = vsub.s32 0, %v787
    %v789 = vrot.slane %v784, %v788
    %791 = vbcast.lane.b32.xlu0 %v789, 256
    %v792 = vpop.permute.xlu0 %791
    %s794 = sor.u32 256, 8
    %795 = vbcast.lane.b32.xlu0 %v789, %s794
    %v796 = vpop.permute.xlu0 %795
    %v797 = vlaneseq
    %v798 = vshrl.u32 %v797, 7
    %v799 = vsub.s32 1, %v798
    %v800 = vrot.slane %v784, %v799
    %802 = vbcast.lane.b32.xlu0 %v800, 256
    %v803 = vpop.permute.xlu0 %802
    %s805 = sor.u32 256, 8
    %806 = vbcast.lane.b32.xlu0 %v800, %s805
    %v807 = vpop.permute.xlu0 %806
    %v808 = vlaneseq
    %v809 = vshrl.u32 %v808, 7
    %v810 = vsub.s32 2, %v809
    %v811 = vrot.slane %v784, %v810
    %813 = vbcast.lane.b32.xlu0 %v811, 256
    %v814 = vpop.permute.xlu0 %813
    %s816 = sor.u32 256, 8
    %817 = vbcast.lane.b32.xlu0 %v811, %s816
    %v818 = vpop.permute.xlu0 %817
    %v819 = vlaneseq
    %v820 = vshrl.u32 %v819, 7
    %v821 = vsub.s32 3, %v820
    %v822 = vrot.slane %v784, %v821
    %824 = vbcast.lane.b32.xlu0 %v822, 256
    %v825 = vpop.permute.xlu0 %824
    %s827 = sor.u32 256, 8
    %828 = vbcast.lane.b32.xlu0 %v822, %s827
    %v829 = vpop.permute.xlu0 %828
    %v830 = vlaneseq
    %v831 = vshrl.u32 %v830, 7
    %v832 = vsub.s32 4, %v831
    %v833 = vrot.slane %v784, %v832
    %835 = vbcast.lane.b32.xlu0 %v833, 256
    %v836 = vpop.permute.xlu0 %835
    %s838 = sor.u32 256, 8
    %839 = vbcast.lane.b32.xlu0 %v833, %s838
    %v840 = vpop.permute.xlu0 %839
    %v841 = vlaneseq
    %v842 = vshrl.u32 %v841, 7
    %v843 = vsub.s32 5, %v842
    %v844 = vrot.slane %v784, %v843
    %846 = vbcast.lane.b32.xlu0 %v844, 256
    %v847 = vpop.permute.xlu0 %846
    %s849 = sor.u32 256, 8
    %850 = vbcast.lane.b32.xlu0 %v844, %s849
    %v851 = vpop.permute.xlu0 %850
    %v852 = vlaneseq
    %v853 = vshrl.u32 %v852, 7
    %v854 = vsub.s32 6, %v853
    %v855 = vrot.slane %v784, %v854
    %857 = vbcast.lane.b32.xlu0 %v855, 256
    %v858 = vpop.permute.xlu0 %857
    %s860 = sor.u32 256, 8
    %861 = vbcast.lane.b32.xlu0 %v855, %s860
    %v862 = vpop.permute.xlu0 %861
    %v863 = vlaneseq
    %v864 = vshrl.u32 %v863, 7
    %v865 = vsub.s32 7, %v864
    %v866 = vrot.slane %v784, %v865
    %868 = vbcast.lane.b32.xlu0 %v866, 256
    %v869 = vpop.permute.xlu0 %868
    %s871 = sor.u32 256, 8
    %872 = vbcast.lane.b32.xlu0 %v866, %s871
    %v873 = vpop.permute.xlu0 %872
    %v874 = vld [vmem:[#allocation5] sm:$0xff]
    %v875 = vld [vmem:[#allocation5 + $0x8] sm:$0xff]
    %v876 = vld [vmem:[#allocation5 + $0x10] sm:$0xff]
    %v877 = vld [vmem:[#allocation5 + $0x18] sm:$0xff]
    %v878 = vld [vmem:[#allocation5 + $0x20] sm:$0xff]
    %v879 = vld [vmem:[#allocation5 + $0x28] sm:$0xff]
    %v880 = vld [vmem:[#allocation5 + $0x30] sm:$0xff]
    %v881 = vld [vmem:[#allocation5 + $0x38] sm:$0xff]
    %v882 = vld [vmem:[#allocation5 + $0x40] sm:$0xff]
    %v883 = vld [vmem:[#allocation5 + $0x48] sm:$0xff]
    %v884 = vld [vmem:[#allocation5 + $0x50] sm:$0xff]
    %v885 = vld [vmem:[#allocation5 + $0x58] sm:$0xff]
    %v886 = vld [vmem:[#allocation5 + $0x60] sm:$0xff]
    %v887 = vld [vmem:[#allocation5 + $0x68] sm:$0xff]
    %v888 = vld [vmem:[#allocation5 + $0x70] sm:$0xff]
    %v889 = vld [vmem:[#allocation5 + $0x78] sm:$0xff]
    %v890 = vmul.f32 %v792, %v874
    %v891 = vmul.f32 %v796, %v875
    %v892 = vmul.f32 %v803, %v876
    %v893 = vmul.f32 %v807, %v877
    %v894 = vmul.f32 %v814, %v878
    %v895 = vmul.f32 %v818, %v879
    %v896 = vmul.f32 %v825, %v880
    %v897 = vmul.f32 %v829, %v881
    %v898 = vmul.f32 %v836, %v882
    %v899 = vmul.f32 %v840, %v883
    %v900 = vmul.f32 %v847, %v884
    %v901 = vmul.f32 %v851, %v885
    %v902 = vmul.f32 %v858, %v886
    %v903 = vmul.f32 %v862, %v887
    %v904 = vmul.f32 %v869, %v888
    %v905 = vmul.f32 %v873, %v889
    %v906 = vsel %vm412, %v890, 0.0
    %v907 = vsel %vm412, %v891, 0.0
    %v908 = vadd.f32 %v906, %v907
    %v909 = vrot.slane %v908, 4
    %v910 = vadd.f32 %v908, %v909
    %v911 = vrot.slane %v910, 2
    %v912 = vadd.f32 %v910, %v911
    %v913 = vrot.slane %v912, 1
    %v914 = vadd.f32 %v912, %v913
    %v915 = vsel %vm412, %v892, 0.0
    %v916 = vsel %vm412, %v893, 0.0
    %v917 = vadd.f32 %v915, %v916
    %v918 = vrot.slane %v917, 4
    %v919 = vadd.f32 %v917, %v918
    %v920 = vrot.slane %v919, 2
    %v921 = vadd.f32 %v919, %v920
    %v922 = vrot.slane %v921, 1
    %v923 = vadd.f32 %v921, %v922
    %v924 = vsel %vm412, %v894, 0.0
    %v925 = vsel %vm412, %v895, 0.0
    %v926 = vadd.f32 %v924, %v925
    %v927 = vrot.slane %v926, 4
    %v928 = vadd.f32 %v926, %v927
    %v929 = vrot.slane %v928, 2
    %v930 = vadd.f32 %v928, %v929
    %v931 = vrot.slane %v930, 1
    %v932 = vadd.f32 %v930, %v931
    %v933 = vsel %vm412, %v896, 0.0
    %v934 = vsel %vm412, %v897, 0.0
    %v935 = vadd.f32 %v933, %v934
    %v936 = vrot.slane %v935, 4
    %v937 = vadd.f32 %v935, %v936
    %v938 = vrot.slane %v937, 2
    %v939 = vadd.f32 %v937, %v938
    %v940 = vrot.slane %v939, 1
    %v941 = vadd.f32 %v939, %v940
    %v942 = vsel %vm412, %v898, 0.0
    %v943 = vsel %vm412, %v899, 0.0
    %v944 = vadd.f32 %v942, %v943
    %v945 = vrot.slane %v944, 4
    %v946 = vadd.f32 %v944, %v945
    %v947 = vrot.slane %v946, 2
    %v948 = vadd.f32 %v946, %v947
    %v949 = vrot.slane %v948, 1
    %v950 = vadd.f32 %v948, %v949
    %v951 = vsel %vm412, %v900, 0.0
    %v952 = vsel %vm412, %v901, 0.0
    %v953 = vadd.f32 %v951, %v952
    %v954 = vrot.slane %v953, 4
    %v955 = vadd.f32 %v953, %v954
    %v956 = vrot.slane %v955, 2
    %v957 = vadd.f32 %v955, %v956
    %v958 = vrot.slane %v957, 1
    %v959 = vadd.f32 %v957, %v958
    %v960 = vsel %vm412, %v902, 0.0
    %v961 = vsel %vm412, %v903, 0.0
    %v962 = vadd.f32 %v960, %v961
    %v963 = vrot.slane %v962, 4
    %v964 = vadd.f32 %v962, %v963
    %v965 = vrot.slane %v964, 2
    %v966 = vadd.f32 %v964, %v965
    %v967 = vrot.slane %v966, 1
    %v968 = vadd.f32 %v966, %v967
    %v969 = vsel %vm412, %v904, 0.0
    %v970 = vsel %vm412, %v905, 0.0
    %v971 = vadd.f32 %v969, %v970
    %v972 = vrot.slane %v971, 4
    %v973 = vadd.f32 %v971, %v972
    %v974 = vrot.slane %v973, 2
    %v975 = vadd.f32 %v973, %v974
    %v976 = vrot.slane %v975, 1
    %v977 = vadd.f32 %v975, %v976
    %v978 = vpack.c.bf16 %v914, %v914
    %v979 = vpack.c.bf16 %v923, %v923
    %v980 = vpack.c.bf16 %v932, %v932
    %v981 = vpack.c.bf16 %v941, %v941
    %v982 = vpack.c.bf16 %v950, %v950
    %v983 = vpack.c.bf16 %v959, %v959
    %v984 = vpack.c.bf16 %v968, %v968
    %v985 = vpack.c.bf16 %v977, %v977
    %v986 = vld [vmem:[#allocation13] sm:$0xff]
    %v987 = vld [vmem:[#allocation13 + $0x8] sm:$0xff]
    %v988 = vld [vmem:[#allocation13 + $0x10] sm:$0xff]
    %v989 = vld [vmem:[#allocation13 + $0x18] sm:$0xff]
    %v990 = vld [vmem:[%s9] sm:$0xff]
    %v991 = vld [vmem:[%s9 + $0x8] sm:$0xff]
    %v992 = vld [vmem:[%s9 + $0x10] sm:$0xff]
    %v993 = vld [vmem:[%s9 + $0x18] sm:$0xff]
    %v994 = vld [vmem:[%s9 + $0x20] sm:$0xff]
    %v995 = vld [vmem:[%s9 + $0x28] sm:$0xff]
    %v996 = vld [vmem:[%s9 + $0x30] sm:$0xff]
    %v997 = vld [vmem:[%s9 + $0x38] sm:$0xff]
    %v1006 = vunpack.c.l.b16 %v978
    %v1007 = vunpack.c.l.b16 %v979
    %v1008 = vunpack.c.l.b16 %v980
    %v1009 = vunpack.c.l.b16 %v981
    %v1010 = vunpack.c.l.b16 %v982
    %v1011 = vunpack.c.l.b16 %v983
    %v1012 = vunpack.c.l.b16 %v984
    %v1013 = vunpack.c.l.b16 %v985
    %v1014 = vsel %vm757, %v1007, %v1006
    %v1015 = vsel %vm759, %v1008, %v1014
    %v1016 = vsel %vm761, %v1009, %v1015
    %v1017 = vsel %vm763, %v1010, %v1016
    %v1018 = vsel %vm765, %v1011, %v1017
    %v1019 = vsel %vm767, %v1012, %v1018
    %v1020 = vsel %vm769, %v1013, %v1019
    %v1021 = vpack.c.b16 %v1020, %v1020
    %v1030 = vunpack.c.l.b16 %v990
    %v1031 = vunpack.c.h.b16 %v990
    %v1032 = vunpack.c.l.b16 %v991
    %v1033 = vunpack.c.h.b16 %v991
    %v1034 = vunpack.c.l.b16 %v992
    %v1035 = vunpack.c.h.b16 %v992
    %v1036 = vunpack.c.l.b16 %v993
    %v1037 = vunpack.c.h.b16 %v993
    %v1038 = vunpack.c.l.b16 %v994
    %v1039 = vunpack.c.h.b16 %v994
    %v1040 = vunpack.c.l.b16 %v995
    %v1041 = vunpack.c.h.b16 %v995
    %v1042 = vunpack.c.l.b16 %v996
    %v1043 = vunpack.c.h.b16 %v996
    %v1044 = vunpack.c.l.b16 %v997
    %v1045 = vunpack.c.h.b16 %v997
    %v1046 = vpack.c.b16 %v1032, %v1030
    %v1047 = vpack.c.b16 %v1033, %v1031
    %v1048 = vpack.c.b16 %v1036, %v1034
    %v1049 = vpack.c.b16 %v1037, %v1035
    %v1050 = vpack.c.b16 %v1040, %v1038
    %v1051 = vpack.c.b16 %v1041, %v1039
    %v1052 = vpack.c.b16 %v1044, %v1042
    %v1053 = vpack.c.b16 %v1045, %v1043
    %v1063 = vsel %vm412, %v1021, 0
    %1065 = vmatprep.subr.bf16.mxu0 %v1047
    %1066 = vmatpush1.bf16.msra.mxu0 %v1046
    %1067 = vmatprep.subr.bf16.mxu0 %v1049
    %1068 = vmatpush1.bf16.msra.mxu0 %v1048
    %1069 = vmatprep.subr.bf16.mxu0 %v1051
    %1070 = vmatpush1.bf16.msra.mxu0 %v1050
    %1071 = vmatprep.subr.bf16.mxu0 %v1053
    %1072 = vmatpush1.bf16.msra.mxu0 %v1052
    %1073 = vmatprep.subr.bf16.mxu0 0
    %1074 = vmatpush1.bf16.msra.mxu0 0
    %1075 = vmatprep.subr.bf16.mxu0 0
    %1076 = vmatpush1.bf16.msra.mxu0 0
    %1077 = vmatprep.subr.bf16.mxu0 0
    %1078 = vmatpush1.bf16.msra.mxu0 0
    %1079 = vmatprep.subr.bf16.mxu0 0
    %1080 = vmatpush1.bf16.msra.mxu0 0
    %1081 = vmatprep.subr.bf16.mxu0 0
    %1082 = vmatpush1.bf16.msra.mxu0 0
    %1083 = vmatprep.subr.bf16.mxu0 0
    %1084 = vmatpush1.bf16.msra.mxu0 0
    %1085 = vmatprep.subr.bf16.mxu0 0
    %1086 = vmatpush1.bf16.msra.mxu0 0
    %1087 = vmatprep.subr.bf16.mxu0 0
    %1088 = vmatpush1.bf16.msra.mxu0 0
    %1089 = vmatprep.subr.bf16.mxu0 0
    %1090 = vmatpush1.bf16.msra.mxu0 0
    %1091 = vmatprep.subr.bf16.mxu0 0
    %1092 = vmatpush1.bf16.msra.mxu0 0
    %1093 = vmatprep.subr.bf16.mxu0 0
    %1094 = vmatpush1.bf16.msra.mxu0 0
    %1095 = vmatprep.subr.bf16.mxu0 0
    %1096 = vmatpush1.bf16.msra.mxu0 0
    %1097 = vmatprep.mubr.bf16.mxu0 0
    %1098 = vmatmul.mubr.bf16.gmra.mrb[0].mxu0 %v1063
    %v1099 = vpop.f32.mrb[0].mxu0
    %v1100 = vadd.f32 0.0, %v1099
    %v1101 = vpop.f32.mrb[0].mxu0
    %v1102 = vadd.f32 0.0, %v1101
    %v1103 = vpop.f32.mrb[0].mxu0
    %v1104 = vpop.f32.mrb[0].mxu0
    %1105 = vdwg.mxu0
    %v1110 = vunpack.c.l.b16 %v986
    %v1111 = vunpack.c.h.b16 %v986
    %v1112 = vunpack.c.l.b16 %v987
    %v1113 = vunpack.c.h.b16 %v987
    %v1114 = vunpack.c.l.b16 %v988
    %v1115 = vunpack.c.h.b16 %v988
    %v1116 = vunpack.c.l.b16 %v989
    %v1117 = vunpack.c.h.b16 %v989
    %v1118 = vpack.c.b16 %v1112, %v1110
    %v1119 = vpack.c.b16 %v1113, %v1111
    %v1120 = vpack.c.b16 %v1116, %v1114
    %v1121 = vpack.c.b16 %v1117, %v1115
    %vm1126 = vcmask 261120
    %v1128 = vsel %vm1126, %v379, 0
    %1130 = vmatprep.subr.bf16.mxu0 %v1119
    %1131 = vmatpush1.bf16.msra.mxu0 %v1118
    %1132 = vmatprep.subr.bf16.mxu0 %v1121
    %1133 = vmatpush1.bf16.msra.mxu0 %v1120
    %1134 = vmatprep.subr.bf16.mxu0 0
    %1135 = vmatpush1.bf16.msra.mxu0 0
    %1136 = vmatprep.subr.bf16.mxu0 0
    %1137 = vmatpush1.bf16.msra.mxu0 0
    %1138 = vmatprep.subr.bf16.mxu0 0
    %1139 = vmatpush1.bf16.msra.mxu0 0
    %1140 = vmatprep.subr.bf16.mxu0 0
    %1141 = vmatpush1.bf16.msra.mxu0 0
    %1142 = vmatprep.subr.bf16.mxu0 0
    %1143 = vmatpush1.bf16.msra.mxu0 0
    %1144 = vmatprep.subr.bf16.mxu0 0
    %1145 = vmatpush1.bf16.msra.mxu0 0
    %1146 = vmatprep.subr.bf16.mxu0 0
    %1147 = vmatpush1.bf16.msra.mxu0 0
    %1148 = vmatprep.subr.bf16.mxu0 0
    %1149 = vmatpush1.bf16.msra.mxu0 0
    %1150 = vmatprep.subr.bf16.mxu0 0
    %1151 = vmatpush1.bf16.msra.mxu0 0
    %1152 = vmatprep.subr.bf16.mxu0 0
    %1153 = vmatpush1.bf16.msra.mxu0 0
    %1154 = vmatprep.subr.bf16.mxu0 0
    %1155 = vmatpush1.bf16.msra.mxu0 0
    %1156 = vmatprep.subr.bf16.mxu0 0
    %1157 = vmatpush1.bf16.msra.mxu0 0
    %1158 = vmatprep.subr.bf16.mxu0 0
    %1159 = vmatpush1.bf16.msra.mxu0 0
    %1160 = vmatprep.subr.bf16.mxu0 0
    %1161 = vmatpush1.bf16.msra.mxu0 0
    %1162 = vmatprep.mubr.bf16.mxu0 0
    %1163 = vmatmul.mubr.bf16.gmra.mrb[0].mxu0 %v1128
    %v1164 = vpop.f32.mrb[0].mxu0
    %v1165 = vadd.f32 %v1100, %v1164
    %v1166 = vpop.f32.mrb[0].mxu0
    %v1167 = vadd.f32 %v1102, %v1166
    %v1168 = vpop.f32.mrb[0].mxu0
    %v1169 = vpop.f32.mrb[0].mxu0
    %1170 = vdwg.mxu0
    %v1171 = vld [vmem:[#allocation14] sm:$0xff]
    %v1172 = vld [vmem:[#allocation14 + $0x8] sm:$0xff]
    %v1173 = vld [vmem:[#allocation14 + $0x10] sm:$0xff]
    %v1174 = vld [vmem:[#allocation14 + $0x18] sm:$0xff]
    %v1175 = vld [vmem:[#allocation14 + $0x20] sm:$0xff]
    %v1176 = vld [vmem:[#allocation14 + $0x28] sm:$0xff]
    %v1177 = vld [vmem:[#allocation14 + $0x30] sm:$0xff]
    %v1178 = vld [vmem:[#allocation14 + $0x38] sm:$0xff]
    %v1179 = vld [vmem:[#allocation16] sm:$0x3]
    %v1180 = vld [vmem:[#allocation17] sm:$0x3]
    %v1182 = vlaneseq
    %v1183 = vshrl.u32 %v1182, 7
    %v1184 = vsub.s32 0, %v1183
    %v1185 = vrot.slane %v1179, %v1184
    %v1186 = vlaneseq
    %v1187 = vshrl.u32 %v1186, 7
    %v1188 = vsub.s32 1, %v1187
    %v1189 = vrot.slane %v1179, %v1188
    %v1192 = vadd.f32 %v1165, %v1185
    %v1193 = vadd.f32 %v1167, %v1189
    %v1195 = vlaneseq
    %v1196 = vshrl.u32 %v1195, 7
    %v1197 = vsub.s32 0, %v1196
    %v1198 = vrot.slane %v1180, %v1197
    %v1199 = vlaneseq
    %v1200 = vshrl.u32 %v1199, 7
    %v1201 = vsub.s32 1, %v1200
    %v1202 = vrot.slane %v1180, %v1201
    %v1213 = vunpack.c.l.b16 %v1171
    %v1214 = vunpack.c.h.b16 %v1171
    %v1215 = vunpack.c.l.b16 %v1172
    %v1216 = vunpack.c.h.b16 %v1172
    %v1217 = vunpack.c.l.b16 %v1173
    %v1218 = vunpack.c.h.b16 %v1173
    %v1219 = vunpack.c.l.b16 %v1174
    %v1220 = vunpack.c.h.b16 %v1174
    %v1221 = vunpack.c.l.b16 %v1175
    %v1222 = vunpack.c.h.b16 %v1175
    %v1223 = vunpack.c.l.b16 %v1176
    %v1224 = vunpack.c.h.b16 %v1176
    %v1225 = vunpack.c.l.b16 %v1177
    %v1226 = vunpack.c.h.b16 %v1177
    %v1227 = vunpack.c.l.b16 %v1178
    %v1228 = vunpack.c.h.b16 %v1178
    %v1229 = vpack.c.b16 %v1215, %v1213
    %v1230 = vpack.c.b16 %v1216, %v1214
    %v1231 = vpack.c.b16 %v1219, %v1217
    %v1232 = vpack.c.b16 %v1220, %v1218
    %v1233 = vpack.c.b16 %v1223, %v1221
    %v1234 = vpack.c.b16 %v1224, %v1222
    %v1235 = vpack.c.b16 %v1227, %v1225
    %v1236 = vpack.c.b16 %v1228, %v1226
    %1245 = vmatprep.subr.bf16.mxu0 %v1230
    %1246 = vmatpush1.bf16.msra.mxu0 %v1229
    %1247 = vmatprep.subr.bf16.mxu0 %v1232
    %1248 = vmatpush1.bf16.msra.mxu0 %v1231
    %1249 = vmatprep.subr.bf16.mxu0 %v1234
    %1250 = vmatpush1.bf16.msra.mxu0 %v1233
    %1251 = vmatprep.subr.bf16.mxu0 %v1236
    %1252 = vmatpush1.bf16.msra.mxu0 %v1235
    %1253 = vmatprep.subr.bf16.mxu0 0
    %1254 = vmatpush1.bf16.msra.mxu0 0
    %1255 = vmatprep.subr.bf16.mxu0 0
    %1256 = vmatpush1.bf16.msra.mxu0 0
    %1257 = vmatprep.subr.bf16.mxu0 0
    %1258 = vmatpush1.bf16.msra.mxu0 0
    %1259 = vmatprep.subr.bf16.mxu0 0
    %1260 = vmatpush1.bf16.msra.mxu0 0
    %1261 = vmatprep.subr.bf16.mxu0 0
    %1262 = vmatpush1.bf16.msra.mxu0 0
    %1263 = vmatprep.subr.bf16.mxu0 0
    %1264 = vmatpush1.bf16.msra.mxu0 0
    %1265 = vmatprep.subr.bf16.mxu0 0
    %1266 = vmatpush1.bf16.msra.mxu0 0
    %1267 = vmatprep.subr.bf16.mxu0 0
    %1268 = vmatpush1.bf16.msra.mxu0 0
    %1269 = vmatprep.subr.bf16.mxu0 0
    %1270 = vmatpush1.bf16.msra.mxu0 0
    %1271 = vmatprep.subr.bf16.mxu0 0
    %1272 = vmatpush1.bf16.msra.mxu0 0
    %1273 = vmatprep.subr.bf16.mxu0 0
    %1274 = vmatpush1.bf16.msra.mxu0 0
    %1275 = vmatprep.subr.bf16.mxu0 0
    %1276 = vmatpush1.bf16.msra.mxu0 0
    %1277 = vmatprep.mubr.bf16.mxu0 0
    %1278 = vmatmul.mubr.bf16.gmra.mrb[0].mxu0 %v414
    %v1279 = vpop.f32.mrb[0].mxu0
    %v1280 = vadd.f32 %v1198, %v1279
    %v1281 = vpop.f32.mrb[0].mxu0
    %v1282 = vadd.f32 %v1202, %v1281
    %v1283 = vpop.f32.mrb[0].mxu0
    %v1284 = vpop.f32.mrb[0].mxu0
    %1285 = vdwg.mxu0
    %v1286 = vadd.f32 %v1192, %v1280
    %v1287 = vxor.u32 %v1286, 2147483648
    %v1288 = vmul.f32 %v1287, 1.442695
    %v1289 = vpow.pop %v1288
    %v1290 = vadd.f32 %v1289, 1.0
    %v1291 = vrcp.pop %v1290
    %v1292 = vmul.f32 1.0, %v1291
    %v1293 = vmul.f32 %v1292, %v1282
    %v1294 = vadd.f32 %v1193, %v1293
    %v1295 = vtanh.pop %v1294
    %v1296 = vsub.f32 1.0, %v1292
    %1298 = vrot.lane.b32.xlu0 %v1295, 64
    %v1299 = vpop.permute.xlu0 %1298
    %v1301 = vmul.f32 %v1296, %v1299
    %1303 = vrot.lane.b32.xlu0 %v263, 64
    %v1304 = vpop.permute.xlu0 %1303
    %v1306 = vmul.f32 %v1292, %v1304
    %v1307 = vadd.f32 %v1301, %v1306
    %v1308 = vpack.c.bf16 %v1307, %v1307
    %v1309 = vld [vmem:[%s13] sm:$0xff]
    %v1310 = vld [vmem:[%s13 + $0x8] sm:$0xff]
    %v1311 = vld [vmem:[%s13 + $0x10] sm:$0xff]
    %v1312 = vld [vmem:[%s13 + $0x18] sm:$0xff]
    %v1313 = vld [vmem:[%s13 + $0x20] sm:$0xff]
    %v1314 = vld [vmem:[%s13 + $0x28] sm:$0xff]
    %v1315 = vld [vmem:[%s13 + $0x30] sm:$0xff]
    %v1316 = vld [vmem:[%s13 + $0x38] sm:$0xff]
    %v1317 = vld [vmem:[#allocation19] sm:$0xff]
    %v1318 = vld [vmem:[#allocation19 + $0x8] sm:$0xff]
    %v1319 = vld [vmem:[#allocation19 + $0x10] sm:$0xff]
    %v1320 = vld [vmem:[#allocation19 + $0x18] sm:$0xff]
    %v1321 = vld [vmem:[#allocation19 + $0x20] sm:$0xff]
    %v1322 = vld [vmem:[#allocation19 + $0x28] sm:$0xff]
    %v1323 = vld [vmem:[#allocation19 + $0x30] sm:$0xff]
    %v1324 = vld [vmem:[#allocation19 + $0x38] sm:$0xff]
    %v1325 = vld [vmem:[#allocation20] sm:$0x3]
    %v1326 = vld [vmem:[#allocation22] sm:$0x3]
    %v1328 = vlaneseq
    %v1329 = vshrl.u32 %v1328, 7
    %v1330 = vsub.s32 0, %v1329
    %v1331 = vrot.slane %v1325, %v1330
    %v1332 = vlaneseq
    %v1333 = vshrl.u32 %v1332, 7
    %v1334 = vsub.s32 1, %v1333
    %v1335 = vrot.slane %v1325, %v1334
    %1339 = vrot.lane.b32.xlu0 %v1308, 64
    %v1340 = vpop.permute.xlu0 %1339
    %v1349 = vunpack.c.l.b16 %v1309
    %v1350 = vunpack.c.h.b16 %v1309
    %v1351 = vunpack.c.l.b16 %v1310
    %v1352 = vunpack.c.h.b16 %v1310
    %v1353 = vunpack.c.l.b16 %v1311
    %v1354 = vunpack.c.h.b16 %v1311
    %v1355 = vunpack.c.l.b16 %v1312
    %v1356 = vunpack.c.h.b16 %v1312
    %v1357 = vunpack.c.l.b16 %v1313
    %v1358 = vunpack.c.h.b16 %v1313
    %v1359 = vunpack.c.l.b16 %v1314
    %v1360 = vunpack.c.h.b16 %v1314
    %v1361 = vunpack.c.l.b16 %v1315
    %v1362 = vunpack.c.h.b16 %v1315
    %v1363 = vunpack.c.l.b16 %v1316
    %v1364 = vunpack.c.h.b16 %v1316
    %v1365 = vpack.c.b16 %v1351, %v1349
    %v1366 = vpack.c.b16 %v1352, %v1350
    %v1367 = vpack.c.b16 %v1355, %v1353
    %v1368 = vpack.c.b16 %v1356, %v1354
    %v1369 = vpack.c.b16 %v1359, %v1357
    %v1370 = vpack.c.b16 %v1360, %v1358
    %v1371 = vpack.c.b16 %v1363, %v1361
    %v1372 = vpack.c.b16 %v1364, %v1362
    %v1382 = vsel %vm412, %v1340, 0
    %1384 = vmatprep.subr.bf16.mxu0 %v1366
    %1385 = vmatpush1.bf16.msra.mxu0 %v1365
    %1386 = vmatprep.subr.bf16.mxu0 %v1368
    %1387 = vmatpush1.bf16.msra.mxu0 %v1367
    %1388 = vmatprep.subr.bf16.mxu0 %v1370
    %1389 = vmatpush1.bf16.msra.mxu0 %v1369
    %1390 = vmatprep.subr.bf16.mxu0 %v1372
    %1391 = vmatpush1.bf16.msra.mxu0 %v1371
    %1392 = vmatprep.subr.bf16.mxu0 0
    %1393 = vmatpush1.bf16.msra.mxu0 0
    %1394 = vmatprep.subr.bf16.mxu0 0
    %1395 = vmatpush1.bf16.msra.mxu0 0
    %1396 = vmatprep.subr.bf16.mxu0 0
    %1397 = vmatpush1.bf16.msra.mxu0 0
    %1398 = vmatprep.subr.bf16.mxu0 0
    %1399 = vmatpush1.bf16.msra.mxu0 0
    %1400 = vmatprep.subr.bf16.mxu0 0
    %1401 = vmatpush1.bf16.msra.mxu0 0
    %1402 = vmatprep.subr.bf16.mxu0 0
    %1403 = vmatpush1.bf16.msra.mxu0 0
    %1404 = vmatprep.subr.bf16.mxu0 0
    %1405 = vmatpush1.bf16.msra.mxu0 0
    %1406 = vmatprep.subr.bf16.mxu0 0
    %1407 = vmatpush1.bf16.msra.mxu0 0
    %1408 = vmatprep.subr.bf16.mxu0 0
    %1409 = vmatpush1.bf16.msra.mxu0 0
    %1410 = vmatprep.subr.bf16.mxu0 0
    %1411 = vmatpush1.bf16.msra.mxu0 0
    %1412 = vmatprep.subr.bf16.mxu0 0
    %1413 = vmatpush1.bf16.msra.mxu0 0
    %1414 = vmatprep.subr.bf16.mxu0 0
    %1415 = vmatpush1.bf16.msra.mxu0 0
    %1416 = vmatprep.mubr.bf16.mxu0 0
    %1417 = vmatmul.mubr.bf16.gmra.mrb[0].mxu0 %v1382
    %v1418 = vpop.f32.mrb[0].mxu0
    %v1419 = vadd.f32 %v1331, %v1418
    %v1420 = vpop.f32.mrb[0].mxu0
    %v1421 = vadd.f32 %v1335, %v1420
    %v1422 = vpop.f32.mrb[0].mxu0
    %v1423 = vpop.f32.mrb[0].mxu0
    %1424 = vdwg.mxu0
    %v1426 = vlaneseq
    %v1427 = vshrl.u32 %v1426, 7
    %v1428 = vsub.s32 0, %v1427
    %v1429 = vrot.slane %v1326, %v1428
    %v1430 = vlaneseq
    %v1431 = vshrl.u32 %v1430, 7
    %v1432 = vsub.s32 1, %v1431
    %v1433 = vrot.slane %v1326, %v1432
    %v1444 = vunpack.c.l.b16 %v1317
    %v1445 = vunpack.c.h.b16 %v1317
    %v1446 = vunpack.c.l.b16 %v1318
    %v1447 = vunpack.c.h.b16 %v1318
    %v1448 = vunpack.c.l.b16 %v1319
    %v1449 = vunpack.c.h.b16 %v1319
    %v1450 = vunpack.c.l.b16 %v1320
    %v1451 = vunpack.c.h.b16 %v1320
    %v1452 = vunpack.c.l.b16 %v1321
    %v1453 = vunpack.c.h.b16 %v1321
    %v1454 = vunpack.c.l.b16 %v1322
    %v1455 = vunpack.c.h.b16 %v1322
    %v1456 = vunpack.c.l.b16 %v1323
    %v1457 = vunpack.c.h.b16 %v1323
    %v1458 = vunpack.c.l.b16 %v1324
    %v1459 = vunpack.c.h.b16 %v1324
    %v1460 = vpack.c.b16 %v1446, %v1444
    %v1461 = vpack.c.b16 %v1447, %v1445
    %v1462 = vpack.c.b16 %v1450, %v1448
    %v1463 = vpack.c.b16 %v1451, %v1449
    %v1464 = vpack.c.b16 %v1454, %v1452
    %v1465 = vpack.c.b16 %v1455, %v1453
    %v1466 = vpack.c.b16 %v1458, %v1456
    %v1467 = vpack.c.b16 %v1459, %v1457
    %1476 = vmatprep.subr.bf16.mxu0 %v1461
    %1477 = vmatpush1.bf16.msra.mxu0 %v1460
    %1478 = vmatprep.subr.bf16.mxu0 %v1463
    %1479 = vmatpush1.bf16.msra.mxu0 %v1462
    %1480 = vmatprep.subr.bf16.mxu0 %v1465
    %1481 = vmatpush1.bf16.msra.mxu0 %v1464
    %1482 = vmatprep.subr.bf16.mxu0 %v1467
    %1483 = vmatpush1.bf16.msra.mxu0 %v1466
    %1484 = vmatprep.subr.bf16.mxu0 0
    %1485 = vmatpush1.bf16.msra.mxu0 0
    %1486 = vmatprep.subr.bf16.mxu0 0
    %1487 = vmatpush1.bf16.msra.mxu0 0
    %1488 = vmatprep.subr.bf16.mxu0 0
    %1489 = vmatpush1.bf16.msra.mxu0 0
    %1490 = vmatprep.subr.bf16.mxu0 0
    %1491 = vmatpush1.bf16.msra.mxu0 0
    %1492 = vmatprep.subr.bf16.mxu0 0
    %1493 = vmatpush1.bf16.msra.mxu0 0
    %1494 = vmatprep.subr.bf16.mxu0 0
    %1495 = vmatpush1.bf16.msra.mxu0 0
    %1496 = vmatprep.subr.bf16.mxu0 0
    %1497 = vmatpush1.bf16.msra.mxu0 0
    %1498 = vmatprep.subr.bf16.mxu0 0
    %1499 = vmatpush1.bf16.msra.mxu0 0
    %1500 = vmatprep.subr.bf16.mxu0 0
    %1501 = vmatpush1.bf16.msra.mxu0 0
    %1502 = vmatprep.subr.bf16.mxu0 0
    %1503 = vmatpush1.bf16.msra.mxu0 0
    %1504 = vmatprep.subr.bf16.mxu0 0
    %1505 = vmatpush1.bf16.msra.mxu0 0
    %1506 = vmatprep.subr.bf16.mxu0 0
    %1507 = vmatpush1.bf16.msra.mxu0 0
    %1508 = vmatprep.mubr.bf16.mxu0 0
    %1509 = vmatmul.mubr.bf16.gmra.mrb[0].mxu0 %v414
    %v1510 = vpop.f32.mrb[0].mxu0
    %v1511 = vadd.f32 %v1429, %v1510
    %v1512 = vpop.f32.mrb[0].mxu0
    %v1513 = vadd.f32 %v1433, %v1512
    %v1514 = vpop.f32.mrb[0].mxu0
    %v1515 = vpop.f32.mrb[0].mxu0
    %1516 = vdwg.mxu0
    %v1517 = vadd.f32 %v1419, %v1511
    %v1518 = vxor.u32 %v1517, 2147483648
    %v1519 = vmul.f32 %v1518, 1.442695
    %v1520 = vpow.pop %v1519
    %v1521 = vadd.f32 %v1520, 1.0
    %v1522 = vrcp.pop %v1521
    %v1523 = vmul.f32 1.0, %v1522
    %v1524 = vmul.f32 %v1523, %v1513
    %v1525 = vadd.f32 %v1421, %v1524
    %v1526 = vtanh.pop %v1525
    %v1527 = vsub.f32 1.0, %v1523
    %1529 = vrot.lane.b32.xlu0 %v1526, 64
    %v1530 = vpop.permute.xlu0 %1529
    %v1532 = vmul.f32 %v1527, %v1530
    %v1533 = vmul.f32 %v1523, %v1304
    %v1534 = vadd.f32 %v1532, %v1533
    %1536 = vrot.lane.b32.xlu0 %v1534, 64
    %v1537 = vpop.permute.xlu0 %1536
    %1539 = vst.msk [vmem:[#allocation27] sm:$0xff] %vm412, %v1537
    %v1540 = vld [vmem:[#allocation23] sm:$0xf]
    %v1541 = vld [vmem:[#allocation23 + $0x4] sm:$0xf]
    %v1542 = vld [vmem:[#allocation23 + $0x8] sm:$0xf]
    %v1543 = vld [vmem:[#allocation23 + $0xc] sm:$0xf]
    %v1544 = vld [vmem:[#allocation25] sm:$0xf]
    %v1545 = vld [vmem:[#allocation25 + $0x4] sm:$0xf]
    %v1546 = vld [vmem:[#allocation25 + $0x8] sm:$0xf]
    %v1547 = vld [vmem:[#allocation25 + $0xc] sm:$0xf]
    %v1548 = vld [vmem:[#allocation25 + $0x10] sm:$0xf]
    %v1549 = vld [vmem:[#allocation25 + $0x14] sm:$0xf]
    %v1550 = vld [vmem:[#allocation25 + $0x18] sm:$0xf]
    %v1551 = vld [vmem:[#allocation25 + $0x1c] sm:$0xf]
    %v1560 = vunpack.c.l.b16 %v1544
    %v1561 = vunpack.c.l.b16 %v1545
    %v1562 = vunpack.c.l.b16 %v1546
    %v1563 = vunpack.c.l.b16 %v1547
    %v1564 = vunpack.c.l.b16 %v1548
    %v1565 = vunpack.c.l.b16 %v1549
    %v1566 = vunpack.c.l.b16 %v1550
    %v1567 = vunpack.c.l.b16 %v1551
    %v1568 = vpack.c.b16 %v1561, %v1560
    %v1569 = vpack.c.b16 %v1563, %v1562
    %v1570 = vpack.c.b16 %v1565, %v1564
    %v1571 = vpack.c.b16 %v1567, %v1566
    %1576 = vmatprep.subr.bf16.mxu0 0
    %1577 = vmatpush1.bf16.msra.mxu0 %v1568
    %1578 = vmatprep.subr.bf16.mxu0 0
    %1579 = vmatpush1.bf16.msra.mxu0 %v1569
    %1580 = vmatprep.subr.bf16.mxu0 0
    %1581 = vmatpush1.bf16.msra.mxu0 %v1570
    %1582 = vmatprep.subr.bf16.mxu0 0
    %1583 = vmatpush1.bf16.msra.mxu0 %v1571
    %1584 = vmatprep.subr.bf16.mxu0 0
    %1585 = vmatpush1.bf16.msra.mxu0 0
    %1586 = vmatprep.subr.bf16.mxu0 0
    %1587 = vmatpush1.bf16.msra.mxu0 0
    %1588 = vmatprep.subr.bf16.mxu0 0
    %1589 = vmatpush1.bf16.msra.mxu0 0
    %1590 = vmatprep.subr.bf16.mxu0 0
    %1591 = vmatpush1.bf16.msra.mxu0 0
    %1592 = vmatprep.subr.bf16.mxu0 0
    %1593 = vmatpush1.bf16.msra.mxu0 0
    %1594 = vmatprep.subr.bf16.mxu0 0
    %1595 = vmatpush1.bf16.msra.mxu0 0
    %1596 = vmatprep.subr.bf16.mxu0 0
    %1597 = vmatpush1.bf16.msra.mxu0 0
    %1598 = vmatprep.subr.bf16.mxu0 0
    %1599 = vmatpush1.bf16.msra.mxu0 0
    %1600 = vmatprep.subr.bf16.mxu0 0
    %1601 = vmatpush1.bf16.msra.mxu0 0
    %1602 = vmatprep.subr.bf16.mxu0 0
    %1603 = vmatpush1.bf16.msra.mxu0 0
    %1604 = vmatprep.subr.bf16.mxu0 0
    %1605 = vmatpush1.bf16.msra.mxu0 0
    %1606 = vmatprep.subr.bf16.mxu0 0
    %1607 = vmatpush1.bf16.msra.mxu0 0
    %1608 = vmatprep.mubr.bf16.mxu0 0
    %1609 = vmatmul.mubr.bf16.gmra.mrb[0].mxu0 %v1063
    %v1610 = vpop.f32.mrb[0].mxu0
    %v1611 = vadd.f32 0.0, %v1610
    %v1612 = vpop.f32.mrb[0].mxu0
    %v1613 = vpop.f32.mrb[0].mxu0
    %v1614 = vpop.f32.mrb[0].mxu0
    %1615 = vdwg.mxu0
    %v1620 = vunpack.c.l.b16 %v1540
    %v1621 = vunpack.c.l.b16 %v1541
    %v1622 = vunpack.c.l.b16 %v1542
    %v1623 = vunpack.c.l.b16 %v1543
    %v1624 = vpack.c.b16 %v1621, %v1620
    %v1625 = vpack.c.b16 %v1623, %v1622
    %1628 = vmatprep.subr.bf16.mxu0 0
    %1629 = vmatpush1.bf16.msra.mxu0 %v1624
    %1630 = vmatprep.subr.bf16.mxu0 0
    %1631 = vmatpush1.bf16.msra.mxu0 %v1625
    %1632 = vmatprep.subr.bf16.mxu0 0
    %1633 = vmatpush1.bf16.msra.mxu0 0
    %1634 = vmatprep.subr.bf16.mxu0 0
    %1635 = vmatpush1.bf16.msra.mxu0 0
    %1636 = vmatprep.subr.bf16.mxu0 0
    %1637 = vmatpush1.bf16.msra.mxu0 0
    %1638 = vmatprep.subr.bf16.mxu0 0
    %1639 = vmatpush1.bf16.msra.mxu0 0
    %1640 = vmatprep.subr.bf16.mxu0 0
    %1641 = vmatpush1.bf16.msra.mxu0 0
    %1642 = vmatprep.subr.bf16.mxu0 0
    %1643 = vmatpush1.bf16.msra.mxu0 0
    %1644 = vmatprep.subr.bf16.mxu0 0
    %1645 = vmatpush1.bf16.msra.mxu0 0
    %1646 = vmatprep.subr.bf16.mxu0 0
    %1647 = vmatpush1.bf16.msra.mxu0 0
    %1648 = vmatprep.subr.bf16.mxu0 0
    %1649 = vmatpush1.bf16.msra.mxu0 0
    %1650 = vmatprep.subr.bf16.mxu0 0
    %1651 = vmatpush1.bf16.msra.mxu0 0
    %1652 = vmatprep.subr.bf16.mxu0 0
    %1653 = vmatpush1.bf16.msra.mxu0 0
    %1654 = vmatprep.subr.bf16.mxu0 0
    %1655 = vmatpush1.bf16.msra.mxu0 0
    %1656 = vmatprep.subr.bf16.mxu0 0
    %1657 = vmatpush1.bf16.msra.mxu0 0
    %1658 = vmatprep.subr.bf16.mxu0 0
    %1659 = vmatpush1.bf16.msra.mxu0 0
    %1660 = vmatprep.mubr.bf16.mxu0 0
    %1661 = vmatmul.mubr.bf16.gmra.mrb[0].mxu0 %v1128
    %v1662 = vpop.f32.mrb[0].mxu0
    %v1663 = vadd.f32 %v1611, %v1662
    %v1664 = vpop.f32.mrb[0].mxu0
    %v1665 = vpop.f32.mrb[0].mxu0
    %v1666 = vpop.f32.mrb[0].mxu0
    %1667 = vdwg.mxu0
    %v1668 = vpack.c.bf16 %v1534, %v1534
    %v1669 = vld [vmem:[%s19] sm:$0xf]
    %v1670 = vld [vmem:[%s19 + $0x4] sm:$0xf]
    %v1671 = vld [vmem:[%s19 + $0x8] sm:$0xf]
    %v1672 = vld [vmem:[%s19 + $0xc] sm:$0xf]
    %v1673 = vld [vmem:[%s19 + $0x10] sm:$0xf]
    %v1674 = vld [vmem:[%s19 + $0x14] sm:$0xf]
    %v1675 = vld [vmem:[%s19 + $0x18] sm:$0xf]
    %v1676 = vld [vmem:[%s19 + $0x1c] sm:$0xf]
    %1678 = vrot.lane.b32.xlu0 %v1668, 64
    %v1679 = vpop.permute.xlu0 %1678
    %v1688 = vunpack.c.l.b16 %v1669
    %v1689 = vunpack.c.l.b16 %v1670
    %v1690 = vunpack.c.l.b16 %v1671
    %v1691 = vunpack.c.l.b16 %v1672
    %v1692 = vunpack.c.l.b16 %v1673
    %v1693 = vunpack.c.l.b16 %v1674
    %v1694 = vunpack.c.l.b16 %v1675
    %v1695 = vunpack.c.l.b16 %v1676
    %v1696 = vpack.c.b16 %v1689, %v1688
    %v1697 = vpack.c.b16 %v1691, %v1690
    %v1698 = vpack.c.b16 %v1693, %v1692
    %v1699 = vpack.c.b16 %v1695, %v1694
    %v1705 = vsel %vm412, %v1679, 0
    %1707 = vmatprep.subr.bf16.mxu0 0
    %1708 = vmatpush1.bf16.msra.mxu0 %v1696
    %1709 = vmatprep.subr.bf16.mxu0 0
    %1710 = vmatpush1.bf16.msra.mxu0 %v1697
    %1711 = vmatprep.subr.bf16.mxu0 0
    %1712 = vmatpush1.bf16.msra.mxu0 %v1698
    %1713 = vmatprep.subr.bf16.mxu0 0
    %1714 = vmatpush1.bf16.msra.mxu0 %v1699
    %1715 = vmatprep.subr.bf16.mxu0 0
    %1716 = vmatpush1.bf16.msra.mxu0 0
    %1717 = vmatprep.subr.bf16.mxu0 0
    %1718 = vmatpush1.bf16.msra.mxu0 0
    %1719 = vmatprep.subr.bf16.mxu0 0
    %1720 = vmatpush1.bf16.msra.mxu0 0
    %1721 = vmatprep.subr.bf16.mxu0 0
    %1722 = vmatpush1.bf16.msra.mxu0 0
    %1723 = vmatprep.subr.bf16.mxu0 0
    %1724 = vmatpush1.bf16.msra.mxu0 0
    %1725 = vmatprep.subr.bf16.mxu0 0
    %1726 = vmatpush1.bf16.msra.mxu0 0
    %1727 = vmatprep.subr.bf16.mxu0 0
    %1728 = vmatpush1.bf16.msra.mxu0 0
    %1729 = vmatprep.subr.bf16.mxu0 0
    %1730 = vmatpush1.bf16.msra.mxu0 0
    %1731 = vmatprep.subr.bf16.mxu0 0
    %1732 = vmatpush1.bf16.msra.mxu0 0
    %1733 = vmatprep.subr.bf16.mxu0 0
    %1734 = vmatpush1.bf16.msra.mxu0 0
    %1735 = vmatprep.subr.bf16.mxu0 0
    %1736 = vmatpush1.bf16.msra.mxu0 0
    %1737 = vmatprep.subr.bf16.mxu0 0
    %1738 = vmatpush1.bf16.msra.mxu0 0
    %1739 = vmatprep.mubr.bf16.mxu0 0
    %1740 = vmatmul.mubr.bf16.gmra.mrb[0].mxu0 %v1705
    %v1741 = vpop.f32.mrb[0].mxu0
    %v1742 = vadd.f32 0.0, %v1741
    %v1743 = vpop.f32.mrb[0].mxu0
    %v1744 = vpop.f32.mrb[0].mxu0
    %v1745 = vpop.f32.mrb[0].mxu0
    %1746 = vdwg.mxu0
    %v1747 = vadd.f32 %v1663, %v1742
    %v1748 = vld [vmem:[%s20] sm:$0x1]
    %v1750 = vlaneseq
    %v1751 = vshrl.u32 %v1750, 7
    %v1752 = vsub.s32 0, %v1751
    %v1753 = vrot.slane %v1748, %v1752
    %v1755 = vadd.f32 %v1747, %v1753
    %1756 = vmax.xlane.f32.xlu0 %v1755
    %v1757 = vpop.xlane.xlu0 %1756
    %v1758 = vsub.f32 %v1755, %v1757
    %v1759 = vmul.f32 %v1758, 1.442695
    %v1760 = vpow.pop %v1759
    %1761 = vadd.xlane.f32.xlu0 %v1760
    %v1762 = vpop.xlane.xlu0 %1761
    %v1763 = vlog2.pop %v1762
    %v1764 = vmul.f32 %v1763, 0.6931472
    %v1765 = vsub.f32 %v1758, %v1764
    %1766 = vst [vmem:[#allocation26] sm:$0xff] %v1765
    // Predicated region
    $region146: #{tpu_custom_call.1} parent=1 // pred_check
      _
    $region147: #{tpu_custom_call.1} parent=1 // pred_check_branch
      %1768 = sbr.rel (0) target = $region149
    $region148: #{tpu_custom_call.1} parent=1 // pred_region
      %s1770 = ssub.s32 128, 128
      %1771 = vsyncadd [#allocation4], %s1770
      %s1773 = sshll.u32 [#allocation26], 4
      %s1774 = int_to_ptr.vmem [resolvable:$true] %s1773
      %1776 = dma.vmem_to_hbm [thread:$0]  %s1774, 128, %s21, [#allocation4]
    $region149: #{tpu_custom_call.1} parent=1 // pred_fallthru
      _
    // Predicated region
    $region150: #{tpu_custom_call.1} parent=1 // pred_check
      _
    $region151: #{tpu_custom_call.1} parent=1 // pred_check_branch
      %1778 = sbr.rel (0) target = $region153
    $region152: #{tpu_custom_call.1} parent=1 // pred_region
      %s1780 = ssub.s32 128, 128
      %1781 = vsyncadd [#allocation28], %s1780
      %s1783 = sshll.u32 [#allocation27], 4
      %s1784 = int_to_ptr.vmem [resolvable:$true] %s1783
      %1786 = dma.vmem_to_hbm [thread:$0]  %s1784, 128, %s22, [#allocation28]
    $region153: #{tpu_custom_call.1} parent=1 // pred_fallthru
      _
    // Predicated region
    $region154: #{tpu_custom_call.1} parent=1 // pred_check
      _
    $region155: #{tpu_custom_call.1} parent=1 // pred_check_branch
      %1788 = sbr.rel (0) target = $region157
    $region156: #{tpu_custom_call.1} parent=1 // pred_region
      %s1790 = ssub.s32 128, 128
      %1791 = vsyncadd [#allocation28], %s1790
      %s1793 = sshll.u32 [#allocation29], 4
      %s1794 = int_to_ptr.vmem [resolvable:$true] %s1793
      %1796 = dma.vmem_to_hbm [thread:$0]  %s1794, 128, %s23, [#allocation28]
    $region157: #{tpu_custom_call.1} parent=1 // pred_fallthru
      _
    // Predicated region
    $region158: #{tpu_custom_call.1} parent=1 // pred_check
      _
    $region159: #{tpu_custom_call.1} parent=1 // pred_check_branch
      %1798 = sbr.rel (0) target = $region161
    $region160: #{tpu_custom_call.1} parent=1 // pred_region
      %1799 = dma.done [#allocation4], 128
    $region161: #{tpu_custom_call.1} parent=1 // pred_fallthru
      _
    // Predicated region
    $region162: #{tpu_custom_call.1} parent=1 // pred_check
      _
    $region163: #{tpu_custom_call.1} parent=1 // pred_check_branch
      %1801 = sbr.rel (0) target = $region165
    $region164: #{tpu_custom_call.1} parent=1 // pred_region
      %1802 = dma.done [#allocation28], 128
    $region165: #{tpu_custom_call.1} parent=1 // pred_fallthru
      _
    // Predicated region
    $region166: #{tpu_custom_call.1} parent=1 // pred_check
      _
    $region167: #{tpu_custom_call.1} parent=1 // pred_check_branch
      %1804 = sbr.rel (0) target = $region169
    $region168: #{tpu_custom_call.1} parent=1 // pred_region
      %1805 = dma.done [#allocation28], 128
    $region169: #{tpu_custom_call.1} parent=1 // pred_fallthru
      _
    %1806 = vsyncpa [#allocation3], 1
    %1807 = vsyncpa [#allocation6], 1
    %1808 = vsyncpa [#allocation9], 1
    %1809 = vsyncpa [#allocation12], 1
    %1810 = vsyncpa [#allocation15], 1
    %1811 = vsyncpa [#allocation18], 1
    %1812 = vsyncpa [#allocation21], 1
    %1813 = vsyncpa [#allocation24], 1
    %1814 = vsyncpa [#allocation4], 1
    %1815 = vsyncpa [#allocation28], 1

</llo_original>
